<compile_context>
chip_gen: v6e
topology: v6e:2x2x1
jax: 0.10.0
libtpu: 0.0.40
codegen_flags: <defaults>
</compile_context>

<pallas_src>
import jax
import jax.numpy as jnp
from jax import lax
from jax.experimental import pallas as pl
from jax.experimental.pallas import tpu as pltpu

NEG_SLOPE = 0.01  # nn.LeakyReLU default negative_slope


def decoder_upsample_block(x, conv_w, conv_b, gamma, beta, eps):
    """x: (N, Cin, D, H, W) float32 (PyTorch NCDHW). Returns (N, Cout, 2D, 2H, 2W) float32."""
    N, Cin, D, H, W = x.shape
    Cout = conv_w.shape[0]
    DH = D * H
    WC = W * Cout          # lane width of conv/BN activations
    KP = (W + 2) * Cin     # contraction width of the kw-banded matmul
    f32 = jnp.float32

    # ---------------- wrapper glue: layout prep (1x-sized / tiny data movement) ----------------
    # channels-last, zero-pad the three spatial dims by 1, fold (W+2, Cin) into the lane axis.
    x_cl = jnp.transpose(x, (0, 2, 3, 4, 1))                               # (N, D, H, W, Cin)
    xp = jnp.pad(x_cl, ((0, 0), (1, 1), (1, 1), (1, 1), (0, 0)))           # (N, D+2, H+2, W+2, Cin)
    xpf = xp.reshape(N, D + 2, H + 2, KP)                                  # (N, D+2, H+2, (W+2)Cin)

    # kw-banded weights: wband[kd, kh, wp*Cin + c, w*Cout + o] = conv_w[o, c, kd, kh, wp - w]
    # (zero outside the 3-tap band).  Built once; tiny.
    w_cl = jnp.transpose(conv_w, (2, 3, 4, 1, 0)).astype(f32)              # (kd, kh, kw, Cin, Cout)
    ind = (jnp.arange(W + 2)[None, :, None]
           == (jnp.arange(W)[None, None, :] + jnp.arange(3)[:, None, None])).astype(f32)  # (3, W+2, W)
    wband = jnp.einsum('kpw,dekco->depcwo', ind, w_cl).reshape(3, 3, KP, WC)
    bias_row = jnp.tile(conv_b.astype(f32), (W,)).reshape(1, WC)           # bias[w*Cout+o] = b[o]
    # TODO(synk): cast xpf/wband to bf16 (keep f32 accumulation) for ~2x MXU rate and ~2x less
    # input DMA once numerically signed off (flagged by perf review).

    # -------- Pallas kernel 1: conv (9 banded MXU matmuls) + bias + LeakyReLU + partial stats --
    def conv_lrelu_stats_kernel(xpf_ref, wband_ref, bias_ref, y_ref, stats_ref):
        acc = jnp.zeros((DH, WC), f32)
        for kd in range(3):                       # unrolled: 9 shift-and-accumulate matmuls
            for kh in range(3):
                slab = xpf_ref[0, pl.ds(kd, D), pl.ds(kh, H), :]           # (D, H, (W+2)Cin)
                acc += jnp.dot(slab.reshape(DH, KP), wband_ref[kd, kh],
                               preferred_element_type=f32)
        acc += bias_ref[...]
        y = jnp.where(acc >= 0, acc, NEG_SLOPE * acc)                      # LeakyReLU
        y_ref[0] = y
        # per-batch partial BatchNorm stats (no cross-grid accumulator -> "parallel" grid ok)
        stats_ref[0, 0:1, :] = jnp.sum(y, axis=0, keepdims=True)
        stats_ref[0, 1:2, :] = jnp.sum(y * y, axis=0, keepdims=True)

    y, part_stats = pl.pallas_call(
        conv_lrelu_stats_kernel,
        out_shape=(jax.ShapeDtypeStruct((N, DH, WC), f32),
                   jax.ShapeDtypeStruct((N, 2, WC), f32)),
        grid_spec=pltpu.PrefetchScalarGridSpec(
            num_scalar_prefetch=0,
            grid=(N,),
            # TODO(synk): for very large D*H*W, halo-tile the D axis (manual DMA double-buffer)
            # so the per-batch padded block keeps fitting v7x's 64 MiB VMEM.
            in_specs=[
                pl.BlockSpec((1, D + 2, H + 2, KP), lambda n: (n, 0, 0, 0)),
                pl.BlockSpec((3, 3, KP, WC), lambda n: (0, 0, 0, 0)),   # resident across grid
                pl.BlockSpec((1, WC), lambda n: (0, 0)),
            ],
            out_specs=[
                pl.BlockSpec((1, DH, WC), lambda n: (n, 0, 0)),
                pl.BlockSpec((1, 2, WC), lambda n: (n, 0, 0)),
            ],
        ),
        compiler_params=pltpu.CompilerParams(
            dimension_semantics=("parallel",),
            vmem_limit_bytes=32 * 1024 * 1024),
    )(xpf, wband, bias_row)

    # -------- wrapper glue: reduce partial stats -> training-mode BN scale/shift (tiny) --------
    s = jnp.sum(part_stats, axis=0).reshape(2, W, Cout).sum(axis=1)        # (2, Cout)
    count = f32(N * D * H * W)
    mean = s[0] / count
    var = s[1] / count - mean * mean              # biased variance (BN training forward)
    inv = gamma.astype(f32) * lax.rsqrt(var + eps)
    scale_row = jnp.tile(inv, (W,)).reshape(1, WC)
    shift_row = jnp.tile(beta.astype(f32) - mean * inv, (W,)).reshape(1, WC)

    # -------- Pallas kernel 2: BN affine fused with 2x nearest upsample (octant writes) --------
    def bn_upsample_kernel(y_ref, scale_ref, shift_ref, o_ref):
        o_ref[0, 0] = y_ref[0] * scale_ref[...] + shift_ref[...]

    zu = pl.pallas_call(
        bn_upsample_kernel,
        out_shape=jax.ShapeDtypeStruct((N, 8, DH, WC), f32),
        grid_spec=pltpu.PrefetchScalarGridSpec(
            num_scalar_prefetch=0,
            grid=(N, 8),                           # octant (replication) axis innermost
            in_specs=[
                # index_map constant over the octant axis: block stays resident, no re-DMA
                pl.BlockSpec((1, DH, WC), lambda n, r: (n, 0, 0)),
                pl.BlockSpec((1, WC), lambda n, r: (0, 0)),
                pl.BlockSpec((1, WC), lambda n, r: (0, 0)),
            ],
            out_specs=pl.BlockSpec((1, 1, DH, WC), lambda n, r: (n, r, 0, 0)),
        ),
        compiler_params=pltpu.CompilerParams(
            dimension_semantics=("parallel", "arbitrary"),
            vmem_limit_bytes=32 * 1024 * 1024),
    )(y, scale_row, shift_row)

    # ----- wrapper glue: single fused transpose/reshape to NCDHW (no separate repeat passes) ---
    out = zu.reshape(N, 2, 2, 2, D, H, W, Cout)                  # (n, a, b, g, d, h, w, o)
    out = jnp.transpose(out, (0, 7, 4, 1, 5, 2, 6, 3))           # (n, o, d, a, h, b, w, g)
    return out.reshape(N, Cout, 2 * D, 2 * H, 2 * W)             # out[n,o,2d+a,2h+b,2w+g]


def reference(x, conv_w, conv_b, gamma, beta, eps):
    """Pure-JAX reference matching the PyTorch forward (train-mode BatchNorm)."""
    y = lax.conv_general_dilated(
        x, conv_w, window_strides=(1, 1, 1), padding="SAME",
        dimension_numbers=("NCDHW", "OIDHW", "NCDHW"))
    y = y + conv_b[None, :, None, None, None]
    y = jnp.where(y >= 0, y, NEG_SLOPE * y)
    mean = jnp.mean(y, axis=(0, 2, 3, 4), keepdims=True)
    var = jnp.mean((y - mean) ** 2, axis=(0, 2, 3, 4), keepdims=True)
    y = (y - mean) / jnp.sqrt(var + eps)
    y = y * gamma[None, :, None, None, None] + beta[None, :, None, None, None]
    y = jnp.repeat(jnp.repeat(jnp.repeat(y, 2, axis=2), 2, axis=3), 2, axis=4)
    return y


if __name__ == "__main__":
    key = jax.random.PRNGKey(0)
    k1, k2, k3 = jax.random.split(key, 3)

    N, Cin, Cout, D, H, W = 2, 4, 8, 8, 8, 8
    eps = jnp.float32(1e-3)          # norm_rate

    x = jax.random.normal(k1, (N, Cin, D, H, W), jnp.float32)
    fan_in = Cin * 3 * 3 * 3
    bound = 1.0 / (fan_in ** 0.5)
    conv_w = jax.random.uniform(k2, (Cout, Cin, 3, 3, 3), jnp.float32, -bound, bound)
    conv_b = jax.random.uniform(k3, (Cout,), jnp.float32, -bound, bound)
    gamma = jnp.ones((Cout,), jnp.float32)   # nn.BatchNorm3d default weight init
    beta = jnp.zeros((Cout,), jnp.float32)   # nn.BatchNorm3d default bias init

    fwd = jax.jit(decoder_upsample_block)
    out = jax.block_until_ready(fwd(x, conv_w, conv_b, gamma, beta, eps))

    assert out.shape == (N, Cout, 2 * D, 2 * H, 2 * W), out.shape
    ref = reference(x, conv_w, conv_b, gamma, beta, eps)
    max_err = float(jnp.max(jnp.abs(out - ref)))
    if max_err > 1e-3:
        raise AssertionError(f"mismatch vs reference: max abs err {max_err}")
    print("KERNEL_OK")
</pallas_src>

<mosaic_0001>
module attributes {stable_mosaic.version = 11 : i64} {
  func.func @conv_lrelu_stats_kernel(%arg0: i32, %arg1: memref<1x10x10x40xf32, #tpu.memory_space<vmem>>, %arg2: memref<3x3x40x64xf32, #tpu.memory_space<vmem>>, %arg3: memref<1x64xf32, #tpu.memory_space<vmem>>, %arg4: memref<1x64x64xf32, #tpu.memory_space<vmem>>, %arg5: memref<1x2x64xf32, #tpu.memory_space<vmem>>) attributes {dimension_semantics = [#tpu.dimension_semantics<parallel>], iteration_bounds = array<i64: 2>, scalar_prefetch = 0 : i64, scratch_operands = 0 : i64, tpu.core_type = #tpu.core_type<tc>, window_params = [{transform_indices = @transform_0, window_bounds = array<i64: 1, 10, 10, 40>}, {pipeline_mode = #tpu.pipeline_mode<synchronous>, transform_indices = @transform_1, window_bounds = array<i64: 3, 3, 40, 64>}, {pipeline_mode = #tpu.pipeline_mode<synchronous>, transform_indices = @transform_2, window_bounds = array<i64: 1, 64>}, {transform_indices = @transform_3, window_bounds = array<i64: 1, 64, 64>}, {transform_indices = @transform_4, window_bounds = array<i64: 1, 2, 64>}]} {
    %cst = arith.constant 0.000000e+00 : f32
    %0 = vector.broadcast %cst : f32 to vector<64x64xf32>
    %c0 = arith.constant 0 : index
    %c0_0 = arith.constant 0 : index
    %c0_1 = arith.constant 0 : index
    %c0_2 = arith.constant 0 : index
    %1 = vector.load %arg1[%c0, %c0_0, %c0_1, %c0_2] : memref<1x10x10x40xf32, #tpu.memory_space<vmem>>, vector<1x8x8x40xf32>
    %2 = vector.shape_cast %1 : vector<1x8x8x40xf32> to vector<8x8x40xf32>
    %3 = vector.shape_cast %2 : vector<8x8x40xf32> to vector<64x40xf32>
    %c0_3 = arith.constant 0 : index
    %c0_4 = arith.constant 0 : index
    %c0_5 = arith.constant 0 : index
    %c0_6 = arith.constant 0 : index
    %4 = vector.load %arg2[%c0_3, %c0_4, %c0_5, %c0_6] : memref<3x3x40x64xf32, #tpu.memory_space<vmem>>, vector<1x1x40x64xf32>
    %5 = vector.shape_cast %4 : vector<1x1x40x64xf32> to vector<40x64xf32>
    %cst_7 = arith.constant dense<0.000000e+00> : vector<64x64xf32>
    %6 = tpu.matmul %3, %5, %cst_7 {dimension_numbers = #tpu.dot_dimension_numbers<[1], [0], [0], [1], [0, 0, 1, 1], [], []>} : vector<64x40xf32>, vector<40x64xf32>, vector<64x64xf32> -> vector<64x64xf32>
    %7 = arith.addf %0, %6 : vector<64x64xf32>
    %c0_8 = arith.constant 0 : index
    %c0_9 = arith.constant 0 : index
    %c1 = arith.constant 1 : index
    %c0_10 = arith.constant 0 : index
    %8 = vector.load %arg1[%c0_8, %c0_9, %c1, %c0_10] : memref<1x10x10x40xf32, #tpu.memory_space<vmem>>, vector<1x8x8x40xf32>
    %9 = vector.shape_cast %8 : vector<1x8x8x40xf32> to vector<8x8x40xf32>
    %10 = vector.shape_cast %9 : vector<8x8x40xf32> to vector<64x40xf32>
    %c0_11 = arith.constant 0 : index
    %c1_12 = arith.constant 1 : index
    %c0_13 = arith.constant 0 : index
    %c0_14 = arith.constant 0 : index
    %11 = vector.load %arg2[%c0_11, %c1_12, %c0_13, %c0_14] : memref<3x3x40x64xf32, #tpu.memory_space<vmem>>, vector<1x1x40x64xf32>
    %12 = vector.shape_cast %11 : vector<1x1x40x64xf32> to vector<40x64xf32>
    %cst_15 = arith.constant dense<0.000000e+00> : vector<64x64xf32>
    %13 = tpu.matmul %10, %12, %cst_15 {dimension_numbers = #tpu.dot_dimension_numbers<[1], [0], [0], [1], [0, 0, 1, 1], [], []>} : vector<64x40xf32>, vector<40x64xf32>, vector<64x64xf32> -> vector<64x64xf32>
    %14 = arith.addf %7, %13 : vector<64x64xf32>
    %c0_16 = arith.constant 0 : index
    %c0_17 = arith.constant 0 : index
    %c2 = arith.constant 2 : index
    %c0_18 = arith.constant 0 : index
    %15 = vector.load %arg1[%c0_16, %c0_17, %c2, %c0_18] : memref<1x10x10x40xf32, #tpu.memory_space<vmem>>, vector<1x8x8x40xf32>
    %16 = vector.shape_cast %15 : vector<1x8x8x40xf32> to vector<8x8x40xf32>
    %17 = vector.shape_cast %16 : vector<8x8x40xf32> to vector<64x40xf32>
    %c0_19 = arith.constant 0 : index
    %c2_20 = arith.constant 2 : index
    %c0_21 = arith.constant 0 : index
    %c0_22 = arith.constant 0 : index
    %18 = vector.load %arg2[%c0_19, %c2_20, %c0_21, %c0_22] : memref<3x3x40x64xf32, #tpu.memory_space<vmem>>, vector<1x1x40x64xf32>
    %19 = vector.shape_cast %18 : vector<1x1x40x64xf32> to vector<40x64xf32>
    %cst_23 = arith.constant dense<0.000000e+00> : vector<64x64xf32>
    %20 = tpu.matmul %17, %19, %cst_23 {dimension_numbers = #tpu.dot_dimension_numbers<[1], [0], [0], [1], [0, 0, 1, 1], [], []>} : vector<64x40xf32>, vector<40x64xf32>, vector<64x64xf32> -> vector<64x64xf32>
    %21 = arith.addf %14, %20 : vector<64x64xf32>
    %c0_24 = arith.constant 0 : index
    %c1_25 = arith.constant 1 : index
    %c0_26 = arith.constant 0 : index
    %c0_27 = arith.constant 0 : index
    %22 = vector.load %arg1[%c0_24, %c1_25, %c0_26, %c0_27] : memref<1x10x10x40xf32, #tpu.memory_space<vmem>>, vector<1x8x8x40xf32>
    %23 = vector.shape_cast %22 : vector<1x8x8x40xf32> to vector<8x8x40xf32>
    %24 = vector.shape_cast %23 : vector<8x8x40xf32> to vector<64x40xf32>
    %c1_28 = arith.constant 1 : index
    %c0_29 = arith.constant 0 : index
    %c0_30 = arith.constant 0 : index
    %c0_31 = arith.constant 0 : index
    %25 = vector.load %arg2[%c1_28, %c0_29, %c0_30, %c0_31] : memref<3x3x40x64xf32, #tpu.memory_space<vmem>>, vector<1x1x40x64xf32>
    %26 = vector.shape_cast %25 : vector<1x1x40x64xf32> to vector<40x64xf32>
    %cst_32 = arith.constant dense<0.000000e+00> : vector<64x64xf32>
    %27 = tpu.matmul %24, %26, %cst_32 {dimension_numbers = #tpu.dot_dimension_numbers<[1], [0], [0], [1], [0, 0, 1, 1], [], []>} : vector<64x40xf32>, vector<40x64xf32>, vector<64x64xf32> -> vector<64x64xf32>
    %28 = arith.addf %21, %27 : vector<64x64xf32>
    %c0_33 = arith.constant 0 : index
    %c1_34 = arith.constant 1 : index
    %c1_35 = arith.constant 1 : index
    %c0_36 = arith.constant 0 : index
    %29 = vector.load %arg1[%c0_33, %c1_34, %c1_35, %c0_36] : memref<1x10x10x40xf32, #tpu.memory_space<vmem>>, vector<1x8x8x40xf32>
    %30 = vector.shape_cast %29 : vector<1x8x8x40xf32> to vector<8x8x40xf32>
    %31 = vector.shape_cast %30 : vector<8x8x40xf32> to vector<64x40xf32>
    %c1_37 = arith.constant 1 : index
    %c1_38 = arith.constant 1 : index
    %c0_39 = arith.constant 0 : index
    %c0_40 = arith.constant 0 : index
    %32 = vector.load %arg2[%c1_37, %c1_38, %c0_39, %c0_40] : memref<3x3x40x64xf32, #tpu.memory_space<vmem>>, vector<1x1x40x64xf32>
    %33 = vector.shape_cast %32 : vector<1x1x40x64xf32> to vector<40x64xf32>
    %cst_41 = arith.constant dense<0.000000e+00> : vector<64x64xf32>
    %34 = tpu.matmul %31, %33, %cst_41 {dimension_numbers = #tpu.dot_dimension_numbers<[1], [0], [0], [1], [0, 0, 1, 1], [], []>} : vector<64x40xf32>, vector<40x64xf32>, vector<64x64xf32> -> vector<64x64xf32>
    %35 = arith.addf %28, %34 : vector<64x64xf32>
    %c0_42 = arith.constant 0 : index
    %c1_43 = arith.constant 1 : index
    %c2_44 = arith.constant 2 : index
    %c0_45 = arith.constant 0 : index
    %36 = vector.load %arg1[%c0_42, %c1_43, %c2_44, %c0_45] : memref<1x10x10x40xf32, #tpu.memory_space<vmem>>, vector<1x8x8x40xf32>
    %37 = vector.shape_cast %36 : vector<1x8x8x40xf32> to vector<8x8x40xf32>
    %38 = vector.shape_cast %37 : vector<8x8x40xf32> to vector<64x40xf32>
    %c1_46 = arith.constant 1 : index
    %c2_47 = arith.constant 2 : index
    %c0_48 = arith.constant 0 : index
    %c0_49 = arith.constant 0 : index
    %39 = vector.load %arg2[%c1_46, %c2_47, %c0_48, %c0_49] : memref<3x3x40x64xf32, #tpu.memory_space<vmem>>, vector<1x1x40x64xf32>
    %40 = vector.shape_cast %39 : vector<1x1x40x64xf32> to vector<40x64xf32>
    %cst_50 = arith.constant dense<0.000000e+00> : vector<64x64xf32>
    %41 = tpu.matmul %38, %40, %cst_50 {dimension_numbers = #tpu.dot_dimension_numbers<[1], [0], [0], [1], [0, 0, 1, 1], [], []>} : vector<64x40xf32>, vector<40x64xf32>, vector<64x64xf32> -> vector<64x64xf32>
    %42 = arith.addf %35, %41 : vector<64x64xf32>
    %c0_51 = arith.constant 0 : index
    %c2_52 = arith.constant 2 : index
    %c0_53 = arith.constant 0 : index
    %c0_54 = arith.constant 0 : index
    %43 = vector.load %arg1[%c0_51, %c2_52, %c0_53, %c0_54] : memref<1x10x10x40xf32, #tpu.memory_space<vmem>>, vector<1x8x8x40xf32>
    %44 = vector.shape_cast %43 : vector<1x8x8x40xf32> to vector<8x8x40xf32>
    %45 = vector.shape_cast %44 : vector<8x8x40xf32> to vector<64x40xf32>
    %c2_55 = arith.constant 2 : index
    %c0_56 = arith.constant 0 : index
    %c0_57 = arith.constant 0 : index
    %c0_58 = arith.constant 0 : index
    %46 = vector.load %arg2[%c2_55, %c0_56, %c0_57, %c0_58] : memref<3x3x40x64xf32, #tpu.memory_space<vmem>>, vector<1x1x40x64xf32>
    %47 = vector.shape_cast %46 : vector<1x1x40x64xf32> to vector<40x64xf32>
    %cst_59 = arith.constant dense<0.000000e+00> : vector<64x64xf32>
    %48 = tpu.matmul %45, %47, %cst_59 {dimension_numbers = #tpu.dot_dimension_numbers<[1], [0], [0], [1], [0, 0, 1, 1], [], []>} : vector<64x40xf32>, vector<40x64xf32>, vector<64x64xf32> -> vector<64x64xf32>
    %49 = arith.addf %42, %48 : vector<64x64xf32>
    %c0_60 = arith.constant 0 : index
    %c2_61 = arith.constant 2 : index
    %c1_62 = arith.constant 1 : index
    %c0_63 = arith.constant 0 : index
    %50 = vector.load %arg1[%c0_60, %c2_61, %c1_62, %c0_63] : memref<1x10x10x40xf32, #tpu.memory_space<vmem>>, vector<1x8x8x40xf32>
    %51 = vector.shape_cast %50 : vector<1x8x8x40xf32> to vector<8x8x40xf32>
    %52 = vector.shape_cast %51 : vector<8x8x40xf32> to vector<64x40xf32>
    %c2_64 = arith.constant 2 : index
    %c1_65 = arith.constant 1 : index
    %c0_66 = arith.constant 0 : index
    %c0_67 = arith.constant 0 : index
    %53 = vector.load %arg2[%c2_64, %c1_65, %c0_66, %c0_67] : memref<3x3x40x64xf32, #tpu.memory_space<vmem>>, vector<1x1x40x64xf32>
    %54 = vector.shape_cast %53 : vector<1x1x40x64xf32> to vector<40x64xf32>
    %cst_68 = arith.constant dense<0.000000e+00> : vector<64x64xf32>
    %55 = tpu.matmul %52, %54, %cst_68 {dimension_numbers = #tpu.dot_dimension_numbers<[1], [0], [0], [1], [0, 0, 1, 1], [], []>} : vector<64x40xf32>, vector<40x64xf32>, vector<64x64xf32> -> vector<64x64xf32>
    %56 = arith.addf %49, %55 : vector<64x64xf32>
    %c0_69 = arith.constant 0 : index
    %c2_70 = arith.constant 2 : index
    %c2_71 = arith.constant 2 : index
    %c0_72 = arith.constant 0 : index
    %57 = vector.load %arg1[%c0_69, %c2_70, %c2_71, %c0_72] : memref<1x10x10x40xf32, #tpu.memory_space<vmem>>, vector<1x8x8x40xf32>
    %58 = vector.shape_cast %57 : vector<1x8x8x40xf32> to vector<8x8x40xf32>
    %59 = vector.shape_cast %58 : vector<8x8x40xf32> to vector<64x40xf32>
    %c2_73 = arith.constant 2 : index
    %c2_74 = arith.constant 2 : index
    %c0_75 = arith.constant 0 : index
    %c0_76 = arith.constant 0 : index
    %60 = vector.load %arg2[%c2_73, %c2_74, %c0_75, %c0_76] : memref<3x3x40x64xf32, #tpu.memory_space<vmem>>, vector<1x1x40x64xf32>
    %61 = vector.shape_cast %60 : vector<1x1x40x64xf32> to vector<40x64xf32>
    %cst_77 = arith.constant dense<0.000000e+00> : vector<64x64xf32>
    %62 = tpu.matmul %59, %61, %cst_77 {dimension_numbers = #tpu.dot_dimension_numbers<[1], [0], [0], [1], [0, 0, 1, 1], [], []>} : vector<64x40xf32>, vector<40x64xf32>, vector<64x64xf32> -> vector<64x64xf32>
    %63 = arith.addf %56, %62 : vector<64x64xf32>
    %c0_78 = arith.constant 0 : index
    %c0_79 = arith.constant 0 : index
    %64 = vector.load %arg3[%c0_78, %c0_79] : memref<1x64xf32, #tpu.memory_space<vmem>>, vector<1x64xf32>
    %65 = vector.broadcast %64 : vector<1x64xf32> to vector<64x64xf32>
    %66 = arith.addf %63, %65 : vector<64x64xf32>
    %cst_80 = arith.constant 0.000000e+00 : f32
    %67 = vector.broadcast %cst_80 : f32 to vector<64x64xf32>
    %68 = arith.cmpf oge, %66, %67 : vector<64x64xf32>
    %cst_81 = arith.constant 0.00999999977 : f32
    %69 = vector.broadcast %cst_81 : f32 to vector<64x64xf32>
    %70 = arith.mulf %69, %66 : vector<64x64xf32>
    %71 = arith.select %68, %66, %70 : vector<64x64xi1>, vector<64x64xf32>
    %c0_82 = arith.constant 0 : index
    %c0_83 = arith.constant 0 : index
    %c0_84 = arith.constant 0 : index
    %72 = vector.load %arg4[%c0_82, %c0_83, %c0_84] : memref<1x64x64xf32, #tpu.memory_space<vmem>>, vector<1x64x64xf32>
    %73 = vector.shape_cast %72 : vector<1x64x64xf32> to vector<64x64xf32>
    %74 = vector.shape_cast %71 : vector<64x64xf32> to vector<1x64x64xf32>
    tpu.vector_store %arg4[%c0_82, %c0_83, %c0_84], %74 {strides = array<i32>} : memref<1x64x64xf32, #tpu.memory_space<vmem>>, vector<1x64x64xf32>,
    %cst_85 = arith.constant dense<0.000000e+00> : vector<64xf32>
    %75 = vector.multi_reduction <add>, %71, %cst_85 [0] : vector<64x64xf32> to vector<64xf32>
    %76 = vector.shape_cast %75 : vector<64xf32> to vector<1x64xf32>
    %c0_86 = arith.constant 0 : index
    %c0_87 = arith.constant 0 : index
    %c0_88 = arith.constant 0 : index
    %77 = vector.load %arg5[%c0_86, %c0_87, %c0_88] : memref<1x2x64xf32, #tpu.memory_space<vmem>>, vector<1x1x64xf32>
    %78 = vector.shape_cast %77 : vector<1x1x64xf32> to vector<1x64xf32>
    %79 = vector.shape_cast %76 : vector<1x64xf32> to vector<1x1x64xf32>
    tpu.vector_store %arg5[%c0_86, %c0_87, %c0_88], %79 {strides = array<i32>} : memref<1x2x64xf32, #tpu.memory_space<vmem>>, vector<1x1x64xf32>,
    %80 = arith.mulf %71, %71 : vector<64x64xf32>
    %cst_89 = arith.constant dense<0.000000e+00> : vector<64xf32>
    %81 = vector.multi_reduction <add>, %80, %cst_89 [0] : vector<64x64xf32> to vector<64xf32>
    %82 = vector.shape_cast %81 : vector<64xf32> to vector<1x64xf32>
    %c0_90 = arith.constant 0 : index
    %c1_91 = arith.constant 1 : index
    %c0_92 = arith.constant 0 : index
    %83 = vector.load %arg5[%c0_90, %c1_91, %c0_92] : memref<1x2x64xf32, #tpu.memory_space<vmem>>, vector<1x1x64xf32>
    %84 = vector.shape_cast %83 : vector<1x1x64xf32> to vector<1x64xf32>
    %85 = vector.shape_cast %82 : vector<1x64xf32> to vector<1x1x64xf32>
    tpu.vector_store %arg5[%c0_90, %c1_91, %c0_92], %85 {strides = array<i32>} : memref<1x2x64xf32, #tpu.memory_space<vmem>>, vector<1x1x64xf32>,
    return
  }
  func.func @transform_0(%arg0: i32) -> (i32, i32, i32, i32) {
    %c0_i32 = arith.constant 0 : i32
    %c0_i32_0 = arith.constant 0 : i32
    %c0_i32_1 = arith.constant 0 : i32
    %c0_i32_2 = arith.constant 0 : i32
    return %arg0, %c0_i32, %c0_i32_0, %c0_i32_1 : i32, i32, i32, i32
  }
  func.func @transform_1(%arg0: i32) -> (i32, i32, i32, i32) {
    %c0_i32 = arith.constant 0 : i32
    %c0_i32_0 = arith.constant 0 : i32
    %c0_i32_1 = arith.constant 0 : i32
    %c0_i32_2 = arith.constant 0 : i32
    %c0_i32_3 = arith.constant 0 : i32
    return %c0_i32, %c0_i32_0, %c0_i32_1, %c0_i32_2 : i32, i32, i32, i32
  }
  func.func @transform_2(%arg0: i32) -> (i32, i32) {
    %c0_i32 = arith.constant 0 : i32
    %c0_i32_0 = arith.constant 0 : i32
    %c0_i32_1 = arith.constant 0 : i32
    return %c0_i32, %c0_i32_0 : i32, i32
  }
  func.func @transform_3(%arg0: i32) -> (i32, i32, i32) {
    %c0_i32 = arith.constant 0 : i32
    %c0_i32_0 = arith.constant 0 : i32
    %c0_i32_1 = arith.constant 0 : i32
    return %arg0, %c0_i32, %c0_i32_0 : i32, i32, i32
  }
  func.func @transform_4(%arg0: i32) -> (i32, i32, i32) {
    %c0_i32 = arith.constant 0 : i32
    %c0_i32_0 = arith.constant 0 : i32
    %c0_i32_1 = arith.constant 0 : i32
    return %arg0, %c0_i32, %c0_i32_0 : i32, i32, i32
  }
}

module attributes {stable_mosaic.version = 11 : i64} {
  func.func @bn_upsample_kernel(%arg0: i32, %arg1: i32, %arg2: memref<1x64x64xf32, #tpu.memory_space<vmem>>, %arg3: memref<1x64xf32, #tpu.memory_space<vmem>>, %arg4: memref<1x64xf32, #tpu.memory_space<vmem>>, %arg5: memref<1x1x64x64xf32, #tpu.memory_space<vmem>>) attributes {dimension_semantics = [#tpu.dimension_semantics<parallel>, #tpu.dimension_semantics<arbitrary>], iteration_bounds = array<i64: 2, 8>, scalar_prefetch = 0 : i64, scratch_operands = 0 : i64, tpu.core_type = #tpu.core_type<tc>, window_params = [{transform_indices = @transform_0, window_bounds = array<i64: 1, 64, 64>}, {pipeline_mode = #tpu.pipeline_mode<synchronous>, transform_indices = @transform_1, window_bounds = array<i64: 1, 64>}, {pipeline_mode = #tpu.pipeline_mode<synchronous>, transform_indices = @transform_2, window_bounds = array<i64: 1, 64>}, {transform_indices = @transform_3, window_bounds = array<i64: 1, 1, 64, 64>}]} {
    %c0 = arith.constant 0 : index
    %c0_0 = arith.constant 0 : index
    %c0_1 = arith.constant 0 : index
    %0 = vector.load %arg2[%c0, %c0_0, %c0_1] : memref<1x64x64xf32, #tpu.memory_space<vmem>>, vector<1x64x64xf32>
    %1 = vector.shape_cast %0 : vector<1x64x64xf32> to vector<64x64xf32>
    %c0_2 = arith.constant 0 : index
    %c0_3 = arith.constant 0 : index
    %2 = vector.load %arg3[%c0_2, %c0_3] : memref<1x64xf32, #tpu.memory_space<vmem>>, vector<1x64xf32>
    %3 = vector.broadcast %2 : vector<1x64xf32> to vector<64x64xf32>
    %4 = arith.mulf %1, %3 : vector<64x64xf32>
    %c0_4 = arith.constant 0 : index
    %c0_5 = arith.constant 0 : index
    %5 = vector.load %arg4[%c0_4, %c0_5] : memref<1x64xf32, #tpu.memory_space<vmem>>, vector<1x64xf32>
    %6 = vector.broadcast %5 : vector<1x64xf32> to vector<64x64xf32>
    %7 = arith.addf %4, %6 : vector<64x64xf32>
    %c0_6 = arith.constant 0 : index
    %c0_7 = arith.constant 0 : index
    %c0_8 = arith.constant 0 : index
    %c0_9 = arith.constant 0 : index
    %8 = vector.load %arg5[%c0_6, %c0_7, %c0_8, %c0_9] : memref<1x1x64x64xf32, #tpu.memory_space<vmem>>, vector<1x1x64x64xf32>
    %9 = vector.shape_cast %8 : vector<1x1x64x64xf32> to vector<64x64xf32>
    %10 = vector.shape_cast %7 : vector<64x64xf32> to vector<1x1x64x64xf32>
    tpu.vector_store %arg5[%c0_6, %c0_7, %c0_8, %c0_9], %10 {strides = array<i32>} : memref<1x1x64x64xf32, #tpu.memory_space<vmem>>, vector<1x1x64x64xf32>,
    return
  }
  func.func @transform_0(%arg0: i32, %arg1: i32) -> (i32, i32, i32) {
    %c0_i32 = arith.constant 0 : i32
    %c0_i32_0 = arith.constant 0 : i32
    %c0_i32_1 = arith.constant 0 : i32
    return %arg0, %c0_i32, %c0_i32_0 : i32, i32, i32
  }
  func.func @transform_1(%arg0: i32, %arg1: i32) -> (i32, i32) {
    %c0_i32 = arith.constant 0 : i32
    %c0_i32_0 = arith.constant 0 : i32
    %c0_i32_1 = arith.constant 0 : i32
    return %c0_i32, %c0_i32_0 : i32, i32
  }
  func.func @transform_2(%arg0: i32, %arg1: i32) -> (i32, i32) {
    %c0_i32 = arith.constant 0 : i32
    %c0_i32_0 = arith.constant 0 : i32
    %c0_i32_1 = arith.constant 0 : i32
    return %c0_i32, %c0_i32_0 : i32, i32
  }
  func.func @transform_3(%arg0: i32, %arg1: i32) -> (i32, i32, i32, i32) {
    %c0_i32 = arith.constant 0 : i32
    %c0_i32_0 = arith.constant 0 : i32
    %c0_i32_1 = arith.constant 0 : i32
    return %arg0, %arg1, %c0_i32, %c0_i32_0 : i32, i32, i32, i32
  }
}

</mosaic_0001>

<llo_original>
// kernel: tile.19
$region0: #{tile.19}
  %s0 = inlined_call_operand.vmem [shape: f32[8,8], index: 0, kind: input, shape index: {}]
  %s1 = inlined_call_operand.vmem [shape: f32[1,64], index: 1, kind: output, shape index: {}]
  $region1: #{tile.19} parent=0
    #allocation0 [shape = 'u8[4096]{0}', space=vmem, size = 0x1000, scoped, tag = 'scoped mem for output reshape']
    %v2 = vld [vmem:[%s0] sm:$0x1]
    %vm3 = vcmask 64512
    %4 = vst.msk [vmem:[#allocation0] sm:$0x1] %vm3, %v2
    %s5 = scalar_lea.vmem %s0, 7
    %v6 = vld [vmem:[%s5] sm:$0x1]
    %7 = vrot.lane.b32.xlu0 %v6, 56
    %v8 = vpop.permute.xlu0 %7
    %vm9 = vcmask 523712
    %10 = vst.msk [vmem:[#allocation0] sm:$0x1] %vm9, %v8
    %s11 = scalar_lea.vmem %s0, 6
    %v12 = vld [vmem:[%s11] sm:$0x1]
    %13 = vrot.lane.b32.xlu0 %v12, 48
    %v14 = vpop.permute.xlu0 %13
    %vm15 = vcmask 458112
    %16 = vst.msk [vmem:[#allocation0] sm:$0x1] %vm15, %v14
    %s17 = scalar_lea.vmem %s0, 5
    %v18 = vld [vmem:[%s17] sm:$0x1]
    %19 = vrot.lane.b32.xlu0 %v18, 40
    %v20 = vpop.permute.xlu0 %19
    %vm21 = vcmask 392512
    %22 = vst.msk [vmem:[#allocation0] sm:$0x1] %vm21, %v20
    %s23 = scalar_lea.vmem %s0, 4
    %v24 = vld [vmem:[%s23] sm:$0x1]
    %25 = vrot.lane.b32.xlu0 %v24, 32
    %v26 = vpop.permute.xlu0 %25
    %vm27 = vcmask 326912
    %28 = vst.msk [vmem:[#allocation0] sm:$0x1] %vm27, %v26
    %s29 = scalar_lea.vmem %s0, 3
    %v30 = vld [vmem:[%s29] sm:$0x1]
    %31 = vrot.lane.b32.xlu0 %v30, 24
    %v32 = vpop.permute.xlu0 %31
    %vm33 = vcmask 261312
    %34 = vst.msk [vmem:[#allocation0] sm:$0x1] %vm33, %v32
    %s35 = scalar_lea.vmem %s0, 2
    %v36 = vld [vmem:[%s35] sm:$0x1]
    %37 = vrot.lane.b32.xlu0 %v36, 16
    %v38 = vpop.permute.xlu0 %37
    %vm39 = vcmask 195712
    %40 = vst.msk [vmem:[#allocation0] sm:$0x1] %vm39, %v38
    %s41 = scalar_lea.vmem %s0, 1
    %v42 = vld [vmem:[%s41] sm:$0x1]
    %43 = vrot.lane.b32.xlu0 %v42, 8
    %v44 = vpop.permute.xlu0 %43
    %vm45 = vcmask 130112
    %46 = vst.msk [vmem:[#allocation0] sm:$0x1] %vm45, %v44
    %s48 = sshll.u32 1, 1
    %s49 = ssub.s32 %s48, 1
    %v51 = vld [vmem:[#allocation0] sm:%s49]
    %s52 = sshll.u32 1, 1
    %s53 = ssub.s32 %s52, 1
    %54 = vst [vmem:[%s1] sm:%s53] %v51

// kernel: tile.18
$region0: #{tile.18}
  #allocation2 [shape = 's32[1]{0}', space=sflag, size = 0x4, scoped, tag = 'scoped memory for tile.18']
  %s0 = inlined_call_operand.hbm [shape: f32[8], index: 0, kind: input, shape index: {}]
  %s1 = inlined_call_operand.vmem [shape: f32[8,8], index: 1, kind: output, shape index: {}]
  $region1: #{tile.18} parent=0
    #allocation0 [shape = 'u8[512]{0}', space=vmem, size = 0x400, scoped, tag = 'operand span for operand 0']
    #allocation1 [shape = 's32[1]{0}', space=sflag, size = 0x4, scoped, tag = 'scoped memory for tile.18']
    %2 = vsyncpa [#allocation1], 0
    // Predicated region
    $region2: #{tile.18} parent=1 // pred_check
      _
    $region3: #{tile.18} parent=1 // pred_check_branch
      %4 = sbr.rel (0) target = $region5
    $region4: #{tile.18} parent=1 // pred_region
      %s6 = ssub.s32 16, 16
      %7 = vsyncadd [#allocation1], %s6
      %s9 = sshll.u32 [#allocation0], 4
      %s10 = int_to_ptr.vmem [resolvable:$true] %s9
      %12 = dma.hbm_to_vmem [thread:$0]  %s0, 16, %s10, [#allocation1]
    $region5: #{tile.18} parent=1 // pred_fallthru
      _
    // Predicated region
    $region6: #{tile.18} parent=1 // pred_check
      _
    $region7: #{tile.18} parent=1 // pred_check_branch
      %14 = sbr.rel (0) target = $region9
    $region8: #{tile.18} parent=1 // pred_region
      %15 = dma.done [#allocation1], 16
    $region9: #{tile.18} parent=1 // pred_fallthru
      _
    %v16 = vld [vmem:[#allocation0] ss:$0 sm:$0xff]
    %17 = vst [vmem:[%s1] sm:$0xff] %v16
    %18 = vsyncpa [#allocation1], 1

// kernel: tile.28
$region0: #{tile.28}
  #allocation0 [shape = 's32[1]{0}', space=sflag, size = 0x4, scoped, tag = 'scoped memory for tile.28']
  %s0 = inlined_call_operand.vmem [shape: f32[8], index: 0, kind: input, shape index: {}]
  %s1 = inlined_call_operand.vmem [shape: f32[8,8], index: 1, kind: output, shape index: {}]
  // Predicated region
  $region2: #{tile.28} parent=0 // pred_check
    _
  $region3: #{tile.28} parent=0 // pred_check_branch
    %3 = sbr.rel (0) target = $region5
  $region4: #{tile.28} parent=0 // pred_region
    _
  $region5: #{tile.28} parent=0 // pred_fallthru
    _
  %v4 = vld [vmem:[%s0] ss:$0 sm:$0xff]
  %5 = vst [vmem:[%s1] sm:$0xff] %v4

// kernel: decoder_upsample_block.3
$region0: #{decoder_upsample_block.3}
  #allocation0 [shape = 'u32[]', space=smem, size = 0x4, offset = 0x4, fixed_abs, tag = 'smem constant byte address 0x4 - core index']
  #allocation1 [shape = 'u32[144,128]{1,0:T(1,128)}', space=vmem, size = 0x12000, scoped, tag = 'internal scratch']
  %s0 = inlined_call_operand.vmem [shape: f32[2,64,64], index: 0, kind: input, shape index: {}]
  %s1 = inlined_call_operand.vmem [shape: f32[1,64], index: 1, kind: input, shape index: {}]
  %s2 = inlined_call_operand.vmem [shape: f32[1,64], index: 2, kind: input, shape index: {}]
  %s3 = inlined_call_operand.vmem [shape: f32[2,8,64,64], index: 3, kind: output, shape index: {}]
  %s4 = sld [smem:[#allocation0]]
  $region45: #{decoder_upsample_block.3} parent=0
    _
  %s6 = ssub.s32 1, %s4
  %s7 = scalar_select 0, %s6, %s4
  loop: start=0, step=1, limit=18
  $region2: #{decoder_upsample_block.3} parent=0 // loop_pre_header
    _
  $region3: #{decoder_upsample_block.3} parent=0 // loop_header
    %s9 = sphi 0, %s13
    %p10 = scmp.ge.s32.totalorder %s9, 18
    %s16 = sphi 0, %s28
    %s17 = sphi 0, %s24
    %s18 = sphi 0, %s16
    %s19 = sphi 0, %s17
    %s20 = sphi 0, %s18
    %s21 = sphi 0, %s19
    %s31 = sphi 0, %s33
    %s34 = sphi 0, %s31
    %s35 = sphi 0, %s34
    %s51 = sphi 0, %s35
    %s55 = sphi 0, %s55
    %s57 = sphi 0, %s55
    %s58 = sphi 0, %s57
    %s72 = sphi 0, %s58
    %s76 = sphi 0, %s76
    %s78 = sphi 0, %s76
    %s79 = sphi 0, %s78
    %s93 = sphi 0, %s79
    %s101 = sphi 0, %s103
    %s104 = sphi 0, %s101
    %s105 = sphi 0, %s104
    %s121 = sphi 0, %s105
  $region4: #{decoder_upsample_block.3} parent=0 // loop_header_branch
    %12 = sbr.rel (%p10) target = $region8
  $region5: #{decoder_upsample_block.3} parent=0 // loop_body
    %s14 = ssub.s32 %s9, 1
    %s15 = ssub.s32 %s9, 2
    %s22 = sadd.s32 1, %s17
    %p23 = scmp.ge.s32.totalorder %s22, 8
    %s24 = scalar_select %p23, 0, %s22
    %s25 = sadd.s32 1, %s16
    %s26 = scalar_select %p23, %s25, %s16
    %p27 = scmp.ge.s32.totalorder %s26, 2
    %s28 = scalar_select %p27, 0, %s26
    %s29 = ssub.s32 %s16, %s28
    %p30 = scmp.eq.s32.totalorder %s29, 0
    %s32 = sadd.s32 %s31, 1
    %s33 = scalar_select %p30, %s31, %s32
    %p36 = pneg %p30
    %p37 = scmp.eq.s32.totalorder %s9, 15
    %p38 = por %p36, %p37
    %p39 = scmp.ne.s32.totalorder %s31, %s34
    %p40 = scmp.eq.s32.totalorder %s9, 0
    %p41 = por %p39, %p40
    %p42 = scmp.ne.s32.totalorder %s31, %s34
    %p43 = scmp.eq.s32.totalorder %s14, 15
    %p44 = por %p42, %p43
    %p45 = scmp.ne.s32.totalorder %s34, %s35
    %p46 = scmp.eq.s32.totalorder %s14, 0
    %p47 = por %p45, %p46
    %p48 = scmp.ne.s32.totalorder %s34, %s35
    %p49 = scmp.eq.s32.totalorder %s15, 15
    %p50 = por %p48, %p49
    %p52 = scmp.ne.s32.totalorder %s35, %s51
    %p53 = scmp.eq.s32.totalorder %s15, 0
    %p54 = por %p52, %p53
    %s56 = sadd.s32 %s55, 1
    %p59 = scmp.eq.s32.totalorder %s9, 15
    %p60 = scmp.ne.s32.totalorder %s55, %s57
    %p61 = scmp.eq.s32.totalorder %s9, 0
    %p62 = por %p60, %p61
    %p63 = scmp.ne.s32.totalorder %s55, %s57
    %p64 = scmp.eq.s32.totalorder %s14, 15
    %p65 = por %p63, %p64
    %p66 = scmp.ne.s32.totalorder %s57, %s58
    %p67 = scmp.eq.s32.totalorder %s14, 0
    %p68 = por %p66, %p67
    %p69 = scmp.ne.s32.totalorder %s57, %s58
    %p70 = scmp.eq.s32.totalorder %s15, 15
    %p71 = por %p69, %p70
    %p73 = scmp.ne.s32.totalorder %s58, %s72
    %p74 = scmp.eq.s32.totalorder %s15, 0
    %p75 = por %p73, %p74
    %s77 = sadd.s32 %s76, 1
    %p80 = scmp.eq.s32.totalorder %s9, 15
    %p81 = scmp.ne.s32.totalorder %s76, %s78
    %p82 = scmp.eq.s32.totalorder %s9, 0
    %p83 = por %p81, %p82
    %p84 = scmp.ne.s32.totalorder %s76, %s78
    %p85 = scmp.eq.s32.totalorder %s14, 15
    %p86 = por %p84, %p85
    %p87 = scmp.ne.s32.totalorder %s78, %s79
    %p88 = scmp.eq.s32.totalorder %s14, 0
    %p89 = por %p87, %p88
    %p90 = scmp.ne.s32.totalorder %s78, %s79
    %p91 = scmp.eq.s32.totalorder %s15, 15
    %p92 = por %p90, %p91
    %p94 = scmp.ne.s32.totalorder %s79, %s93
    %p95 = scmp.eq.s32.totalorder %s15, 0
    %p96 = por %p94, %p95
    %s97 = ssub.s32 %s16, %s28
    %s98 = ssub.s32 %s17, %s24
    %s99 = sor.u32 %s97, %s98
    %p100 = scmp.eq.s32.totalorder %s99, 0
    %s102 = sadd.s32 %s101, 1
    %s103 = scalar_select %p100, %s101, %s102
    %p106 = pneg %p100
    %p107 = scmp.eq.s32.totalorder %s9, 15
    %p108 = por %p106, %p107
    %p109 = scmp.ne.s32.totalorder %s101, %s104
    %p110 = scmp.eq.s32.totalorder %s9, 0
    %p111 = por %p109, %p110
    %p112 = scmp.ne.s32.totalorder %s101, %s104
    %p113 = scmp.eq.s32.totalorder %s14, 15
    %p114 = por %p112, %p113
    %p115 = scmp.ne.s32.totalorder %s104, %s105
    %p116 = scmp.eq.s32.totalorder %s14, 0
    %p117 = por %p115, %p116
    %p118 = scmp.ne.s32.totalorder %s104, %s105
    %p119 = scmp.eq.s32.totalorder %s15, 15
    %p120 = por %p118, %p119
    %p122 = scmp.ne.s32.totalorder %s105, %s121
    %p123 = scmp.eq.s32.totalorder %s15, 0
    %p124 = por %p122, %p123
    %p125 = scmp.le.s32.totalorder 1, %s9
    %p126 = scmp.lt.s32.totalorder %s9, 17
    %p127 = pnand %p125, %p126
    %p128 = pneg %p127
    // Predicated region
    $region9: #{decoder_upsample_block.3} parent=5 // pred_check
      _
    $region10: #{decoder_upsample_block.3} parent=5 // pred_check_branch
      %130 = sbr.rel (%p127) target = $region12
    $region11: #{decoder_upsample_block.3} parent=5 // pred_region
      %s131 = ssub.s32 %s9, 1
      // Predicated region
      $region13: #{decoder_upsample_block.3} parent=11 // pred_check
        %p132 = pneg %p68
      $region14: #{decoder_upsample_block.3} parent=11 // pred_check_branch
        %134 = sbr.rel (%p132) target = $region16
      $region15: #{decoder_upsample_block.3} parent=11 // pred_region
        _
      $region16: #{decoder_upsample_block.3} parent=11 // pred_fallthru
        _
      // Predicated region
      $region17: #{decoder_upsample_block.3} parent=11 // pred_check
        %p135 = pneg %p89
      $region18: #{decoder_upsample_block.3} parent=11 // pred_check_branch
        %137 = sbr.rel (%p135) target = $region20
      $region19: #{decoder_upsample_block.3} parent=11 // pred_region
        _
      $region20: #{decoder_upsample_block.3} parent=11 // pred_fallthru
        _
    $region12: #{decoder_upsample_block.3} parent=5 // pred_fallthru
      _
    %p138 = scmp.lt.s32.totalorder %s9, 16
    // Predicated region
    $region21: #{decoder_upsample_block.3} parent=5 // pred_check
      %p139 = pneg %p138
    $region22: #{decoder_upsample_block.3} parent=5 // pred_check_branch
      %141 = sbr.rel (%p139) target = $region24
    $region23: #{decoder_upsample_block.3} parent=5 // pred_region
      // Predicated region
      $region25: #{decoder_upsample_block.3} parent=23 // pred_check
        %p142 = pneg %p41
      $region26: #{decoder_upsample_block.3} parent=23 // pred_check_branch
        %144 = sbr.rel (%p142) target = $region28
      $region27: #{decoder_upsample_block.3} parent=23 // pred_region
        %p145 = scmp.lt.s32.totalorder %s16, 1
        %s146 = scalar_select %p145, %s16, 1
        %s147 = smul.addr %s146, 8
        %s148 = smul.addr %s147, 8
        %s149 = scalar_lea.vmem %s0, %s148
      $region28: #{decoder_upsample_block.3} parent=23 // pred_fallthru
        _
    $region24: #{decoder_upsample_block.3} parent=5 // pred_fallthru
      _
    %p150 = scmp.le.s32.totalorder 1, %s9
    %p151 = scmp.lt.s32.totalorder %s9, 17
    %p152 = pnand %p150, %p151
    %p153 = pneg %p152
    // Predicated region
    $region29: #{decoder_upsample_block.3} parent=5 // pred_check
      _
    $region30: #{decoder_upsample_block.3} parent=5 // pred_check_branch
      %155 = sbr.rel (%p152) target = $region32
    $region31: #{decoder_upsample_block.3} parent=5 // pred_region
      %s156 = ssub.s32 %s9, 1
      %p157 = scmp.lt.s32.totalorder %s18, 1
      %s158 = scalar_select %p157, %s18, 1
      %s159 = smul.addr %s158, 8
      %s160 = smul.addr %s159, 8
      %s161 = scalar_lea.vmem %s0, %s160
      %p162 = pneg %p47
      %p163 = pneg %p44
      %p164 = pneg %p68
      %p165 = pneg %p65
      %p166 = pneg %p89
      %p167 = pneg %p86
      %p168 = pneg %p117
      %p169 = pneg %p114
      %p170 = scmp.lt.s32.totalorder %s18, 1
      %s171 = scalar_select %p170, %s18, 1
      %p172 = scmp.lt.s32.totalorder %s19, 7
      %s173 = scalar_select %p172, %s19, 7
      %s174 = smul.addr %s173, 8
      %s175 = smul.addr %s171, 64
      %s176 = sadd.s32 %s174, %s175
      %s177 = smul.addr %s176, 8
      %s178 = scalar_lea.vmem %s3, %s177
      %p179 = scmp.lt.s32.totalorder %s18, 1
      %s180 = scalar_select %p179, %s18, 1
      %s181 = smul.addr %s180, 8
      %s182 = smul.addr %s181, 8
      %s183 = scalar_lea.vmem %s0, %s182
      %p184 = scmp.lt.s32.totalorder %s18, 1
      %s185 = scalar_select %p184, %s18, 1
      %p186 = scmp.lt.s32.totalorder %s19, 7
      %s187 = scalar_select %p186, %s19, 7
      %s188 = smul.addr %s187, 8
      %s189 = smul.addr %s185, 64
      %s190 = sadd.s32 %s188, %s189
      %s191 = smul.addr %s190, 8
      %s192 = scalar_lea.vmem %s3, %s191
      %v193 = vld [vmem:[%s183] sm:$0xff]
      %v194 = vld [vmem:[%s183 + $0x8] sm:$0xff]
      %v195 = vld [vmem:[%s183 + $0x10] sm:$0xff]
      %v196 = vld [vmem:[%s183 + $0x18] sm:$0xff]
      %v197 = vld [vmem:[%s183 + $0x20] sm:$0xff]
      %v198 = vld [vmem:[%s183 + $0x28] sm:$0xff]
      %v199 = vld [vmem:[%s183 + $0x30] sm:$0xff]
      %v200 = vld [vmem:[%s183 + $0x38] sm:$0xff]
      %v201 = vld [vmem:[%s1] sm:$0x1]
      %v203 = vlaneseq
      %v204 = vshrl.u32 %v203, 7
      %v205 = vsub.s32 0, %v204
      %v206 = vrot.slane %v201, %v205
      %v208 = vmul.f32 %v193, %v206
      %v209 = vmul.f32 %v194, %v206
      %v210 = vmul.f32 %v195, %v206
      %v211 = vmul.f32 %v196, %v206
      %v212 = vmul.f32 %v197, %v206
      %v213 = vmul.f32 %v198, %v206
      %v214 = vmul.f32 %v199, %v206
      %v215 = vmul.f32 %v200, %v206
      %v216 = vld [vmem:[%s2] sm:$0x1]
      %v218 = vlaneseq
      %v219 = vshrl.u32 %v218, 7
      %v220 = vsub.s32 0, %v219
      %v221 = vrot.slane %v216, %v220
      %v223 = vadd.f32 %v208, %v221
      %v224 = vadd.f32 %v209, %v221
      %v225 = vadd.f32 %v210, %v221
      %v226 = vadd.f32 %v211, %v221
      %v227 = vadd.f32 %v212, %v221
      %v228 = vadd.f32 %v213, %v221
      %v229 = vadd.f32 %v214, %v221
      %v230 = vadd.f32 %v215, %v221
      %vm231 = vcmask 523264
      %232 = vst.msk [vmem:[%s192] sm:$0xff] %vm231, %v223
      %233 = vst.msk [vmem:[%s192 + $0x8] sm:$0xff] %vm231, %v224
      %234 = vst.msk [vmem:[%s192 + $0x10] sm:$0xff] %vm231, %v225
      %235 = vst.msk [vmem:[%s192 + $0x18] sm:$0xff] %vm231, %v226
      %236 = vst.msk [vmem:[%s192 + $0x20] sm:$0xff] %vm231, %v227
      %237 = vst.msk [vmem:[%s192 + $0x28] sm:$0xff] %vm231, %v228
      %238 = vst.msk [vmem:[%s192 + $0x30] sm:$0xff] %vm231, %v229
      %239 = vst.msk [vmem:[%s192 + $0x38] sm:$0xff] %vm231, %v230
      %p240 = scmp.lt.s32.totalorder %s18, 1
      %s241 = scalar_select %p240, %s18, 1
      %p242 = scmp.lt.s32.totalorder %s19, 7
      %s243 = scalar_select %p242, %s19, 7
      %s244 = smul.addr %s243, 8
      %s245 = smul.addr %s241, 64
      %s246 = sadd.s32 %s244, %s245
      %s247 = smul.addr %s246, 8
      %s248 = scalar_lea.vmem %s3, %s247
      // Predicated region
      $region33: #{decoder_upsample_block.3} parent=31 // pred_check
        %p249 = pneg %p114
      $region34: #{decoder_upsample_block.3} parent=31 // pred_check_branch
        %251 = sbr.rel (%p249) target = $region36
      $region35: #{decoder_upsample_block.3} parent=31 // pred_region
        _
      $region36: #{decoder_upsample_block.3} parent=31 // pred_fallthru
        _
    $region32: #{decoder_upsample_block.3} parent=5 // pred_fallthru
      _
    %p252 = scmp.le.s32.totalorder 2, %s9
    // Predicated region
    $region37: #{decoder_upsample_block.3} parent=5 // pred_check
      %p253 = pneg %p252
    $region38: #{decoder_upsample_block.3} parent=5 // pred_check_branch
      %255 = sbr.rel (%p253) target = $region40
    $region39: #{decoder_upsample_block.3} parent=5 // pred_region
      %s256 = ssub.s32 %s9, 2
      // Predicated region
      $region41: #{decoder_upsample_block.3} parent=39 // pred_check
        %p257 = pneg %p120
      $region42: #{decoder_upsample_block.3} parent=39 // pred_check_branch
        %259 = sbr.rel (%p257) target = $region44
      $region43: #{decoder_upsample_block.3} parent=39 // pred_region
        %p260 = scmp.lt.s32.totalorder %s20, 1
        %s261 = scalar_select %p260, %s20, 1
        %p262 = scmp.lt.s32.totalorder %s21, 7
        %s263 = scalar_select %p262, %s21, 7
        %s264 = smul.addr %s263, 8
        %s265 = smul.addr %s261, 64
        %s266 = sadd.s32 %s264, %s265
        %s267 = smul.addr %s266, 8
        %s268 = scalar_lea.vmem %s3, %s267
      $region44: #{decoder_upsample_block.3} parent=39 // pred_fallthru
        _
    $region40: #{decoder_upsample_block.3} parent=5 // pred_fallthru
      _
  $region6: #{decoder_upsample_block.3} parent=0 // loop_footer
    %s13 = sadd.s32 1, %s9
  $region7: #{decoder_upsample_block.3} parent=0 // loop_footer_branch
    %8 = sbr.rel target = $region3
  $region8: #{decoder_upsample_block.3} parent=0 // loop_exit
    _

// kernel: decoder_upsample_block.2
$region0: #{decoder_upsample_block.2}
  #allocation0 [shape = 'u32[]', space=smem, size = 0x4, offset = 0x4, fixed_abs, tag = 'smem constant byte address 0x4 - core index']
  #allocation1 [shape = 'u32[144,128]{1,0:T(1,128)}', space=vmem, size = 0x12000, scoped, tag = 'internal scratch']
  %s0 = inlined_call_operand.vmem [shape: f32[2,10,10,40], index: 0, kind: input, shape index: {}]
  %s1 = inlined_call_operand.vmem [shape: f32[3,3,40,64], index: 1, kind: input, shape index: {}]
  %s2 = inlined_call_operand.vmem [shape: f32[1,64], index: 2, kind: input, shape index: {}]
  %s3 = inlined_call_operand.vmem [shape: f32[2,64,64], index: 3, kind: output, shape index: {0}]
  %s4 = inlined_call_operand.vmem [shape: f32[2,2,64], index: 4, kind: output, shape index: {1}]
  %5 = xla_tuple %s3, %s4
  %s6 = sld [smem:[#allocation0]]
  $region53: #{decoder_upsample_block.2} parent=0
    _
  %s8 = ssub.s32 1, %s6
  %s9 = scalar_select 0, %s8, %s6
  loop: start=0, step=1, limit=4
  $region2: #{decoder_upsample_block.2} parent=0 // loop_pre_header
    _
  $region3: #{decoder_upsample_block.2} parent=0 // loop_header
    %s11 = sphi 0, %s15
    %p12 = scmp.ge.s32.totalorder %s11, 4
    %s21 = sphi 0, %s23
    %s24 = sphi 0, %s21
    %s25 = sphi 0, %s24
    %s41 = sphi 0, %s25
    %s45 = sphi 0, %s45
    %s47 = sphi 0, %s45
    %s48 = sphi 0, %s47
    %s62 = sphi 0, %s48
    %s66 = sphi 0, %s66
    %s68 = sphi 0, %s66
    %s69 = sphi 0, %s68
    %s83 = sphi 0, %s69
    %s89 = sphi 0, %s91
    %s92 = sphi 0, %s89
    %s93 = sphi 0, %s92
    %s109 = sphi 0, %s93
    %s115 = sphi 0, %s117
    %s118 = sphi 0, %s115
    %s119 = sphi 0, %s118
    %s135 = sphi 0, %s119
  $region4: #{decoder_upsample_block.2} parent=0 // loop_header_branch
    %14 = sbr.rel (%p12) target = $region8
  $region5: #{decoder_upsample_block.2} parent=0 // loop_body
    %s16 = ssub.s32 %s11, 1
    %s17 = ssub.s32 %s11, 2
    %s18 = sadd.s32 %s11, 1
    %s19 = ssub.s32 %s11, %s18
    %p20 = scmp.eq.s32.totalorder %s19, 0
    %s22 = sadd.s32 %s21, 1
    %s23 = scalar_select %p20, %s21, %s22
    %p26 = pneg %p20
    %p27 = scmp.eq.s32.totalorder %s11, 1
    %p28 = por %p26, %p27
    %p29 = scmp.ne.s32.totalorder %s21, %s24
    %p30 = scmp.eq.s32.totalorder %s11, 0
    %p31 = por %p29, %p30
    %p32 = scmp.ne.s32.totalorder %s21, %s24
    %p33 = scmp.eq.s32.totalorder %s16, 1
    %p34 = por %p32, %p33
    %p35 = scmp.ne.s32.totalorder %s24, %s25
    %p36 = scmp.eq.s32.totalorder %s16, 0
    %p37 = por %p35, %p36
    %p38 = scmp.ne.s32.totalorder %s24, %s25
    %p39 = scmp.eq.s32.totalorder %s17, 1
    %p40 = por %p38, %p39
    %p42 = scmp.ne.s32.totalorder %s25, %s41
    %p43 = scmp.eq.s32.totalorder %s17, 0
    %p44 = por %p42, %p43
    %s46 = sadd.s32 %s45, 1
    %p49 = scmp.eq.s32.totalorder %s11, 1
    %p50 = scmp.ne.s32.totalorder %s45, %s47
    %p51 = scmp.eq.s32.totalorder %s11, 0
    %p52 = por %p50, %p51
    %p53 = scmp.ne.s32.totalorder %s45, %s47
    %p54 = scmp.eq.s32.totalorder %s16, 1
    %p55 = por %p53, %p54
    %p56 = scmp.ne.s32.totalorder %s47, %s48
    %p57 = scmp.eq.s32.totalorder %s16, 0
    %p58 = por %p56, %p57
    %p59 = scmp.ne.s32.totalorder %s47, %s48
    %p60 = scmp.eq.s32.totalorder %s17, 1
    %p61 = por %p59, %p60
    %p63 = scmp.ne.s32.totalorder %s48, %s62
    %p64 = scmp.eq.s32.totalorder %s17, 0
    %p65 = por %p63, %p64
    %s67 = sadd.s32 %s66, 1
    %p70 = scmp.eq.s32.totalorder %s11, 1
    %p71 = scmp.ne.s32.totalorder %s66, %s68
    %p72 = scmp.eq.s32.totalorder %s11, 0
    %p73 = por %p71, %p72
    %p74 = scmp.ne.s32.totalorder %s66, %s68
    %p75 = scmp.eq.s32.totalorder %s16, 1
    %p76 = por %p74, %p75
    %p77 = scmp.ne.s32.totalorder %s68, %s69
    %p78 = scmp.eq.s32.totalorder %s16, 0
    %p79 = por %p77, %p78
    %p80 = scmp.ne.s32.totalorder %s68, %s69
    %p81 = scmp.eq.s32.totalorder %s17, 1
    %p82 = por %p80, %p81
    %p84 = scmp.ne.s32.totalorder %s69, %s83
    %p85 = scmp.eq.s32.totalorder %s17, 0
    %p86 = por %p84, %p85
    %s87 = ssub.s32 %s11, %s18
    %p88 = scmp.eq.s32.totalorder %s87, 0
    %s90 = sadd.s32 %s89, 1
    %s91 = scalar_select %p88, %s89, %s90
    %p94 = pneg %p88
    %p95 = scmp.eq.s32.totalorder %s11, 1
    %p96 = por %p94, %p95
    %p97 = scmp.ne.s32.totalorder %s89, %s92
    %p98 = scmp.eq.s32.totalorder %s11, 0
    %p99 = por %p97, %p98
    %p100 = scmp.ne.s32.totalorder %s89, %s92
    %p101 = scmp.eq.s32.totalorder %s16, 1
    %p102 = por %p100, %p101
    %p103 = scmp.ne.s32.totalorder %s92, %s93
    %p104 = scmp.eq.s32.totalorder %s16, 0
    %p105 = por %p103, %p104
    %p106 = scmp.ne.s32.totalorder %s92, %s93
    %p107 = scmp.eq.s32.totalorder %s17, 1
    %p108 = por %p106, %p107
    %p110 = scmp.ne.s32.totalorder %s93, %s109
    %p111 = scmp.eq.s32.totalorder %s17, 0
    %p112 = por %p110, %p111
    %s113 = ssub.s32 %s11, %s18
    %p114 = scmp.eq.s32.totalorder %s113, 0
    %s116 = sadd.s32 %s115, 1
    %s117 = scalar_select %p114, %s115, %s116
    %p120 = pneg %p114
    %p121 = scmp.eq.s32.totalorder %s11, 1
    %p122 = por %p120, %p121
    %p123 = scmp.ne.s32.totalorder %s115, %s118
    %p124 = scmp.eq.s32.totalorder %s11, 0
    %p125 = por %p123, %p124
    %p126 = scmp.ne.s32.totalorder %s115, %s118
    %p127 = scmp.eq.s32.totalorder %s16, 1
    %p128 = por %p126, %p127
    %p129 = scmp.ne.s32.totalorder %s118, %s119
    %p130 = scmp.eq.s32.totalorder %s16, 0
    %p131 = por %p129, %p130
    %p132 = scmp.ne.s32.totalorder %s118, %s119
    %p133 = scmp.eq.s32.totalorder %s17, 1
    %p134 = por %p132, %p133
    %p136 = scmp.ne.s32.totalorder %s119, %s135
    %p137 = scmp.eq.s32.totalorder %s17, 0
    %p138 = por %p136, %p137
    %p139 = scmp.le.s32.totalorder 1, %s11
    %p140 = scmp.lt.s32.totalorder %s11, 3
    %p141 = pnand %p139, %p140
    %p142 = pneg %p141
    // Predicated region
    $region9: #{decoder_upsample_block.2} parent=5 // pred_check
      _
    $region10: #{decoder_upsample_block.2} parent=5 // pred_check_branch
      %144 = sbr.rel (%p141) target = $region12
    $region11: #{decoder_upsample_block.2} parent=5 // pred_region
      %s145 = ssub.s32 %s11, 1
      // Predicated region
      $region13: #{decoder_upsample_block.2} parent=11 // pred_check
        %p146 = pneg %p58
      $region14: #{decoder_upsample_block.2} parent=11 // pred_check_branch
        %148 = sbr.rel (%p146) target = $region16
      $region15: #{decoder_upsample_block.2} parent=11 // pred_region
        _
      $region16: #{decoder_upsample_block.2} parent=11 // pred_fallthru
        _
      // Predicated region
      $region17: #{decoder_upsample_block.2} parent=11 // pred_check
        %p149 = pneg %p79
      $region18: #{decoder_upsample_block.2} parent=11 // pred_check_branch
        %151 = sbr.rel (%p149) target = $region20
      $region19: #{decoder_upsample_block.2} parent=11 // pred_region
        _
      $region20: #{decoder_upsample_block.2} parent=11 // pred_fallthru
        _
    $region12: #{decoder_upsample_block.2} parent=5 // pred_fallthru
      _
    %p152 = scmp.lt.s32.totalorder %s11, 2
    // Predicated region
    $region21: #{decoder_upsample_block.2} parent=5 // pred_check
      %p153 = pneg %p152
    $region22: #{decoder_upsample_block.2} parent=5 // pred_check_branch
      %155 = sbr.rel (%p153) target = $region24
    $region23: #{decoder_upsample_block.2} parent=5 // pred_region
      // Predicated region
      $region25: #{decoder_upsample_block.2} parent=23 // pred_check
        %p156 = pneg %p31
      $region26: #{decoder_upsample_block.2} parent=23 // pred_check_branch
        %158 = sbr.rel (%p156) target = $region28
      $region27: #{decoder_upsample_block.2} parent=23 // pred_region
        %p159 = scmp.lt.s32.totalorder %s11, 1
        %s160 = scalar_select %p159, %s11, 1
        %s161 = smul.addr %s160, 20
        %s162 = smul.addr %s161, 8
        %s163 = scalar_lea.vmem %s0, %s162
      $region28: #{decoder_upsample_block.2} parent=23 // pred_fallthru
        _
    $region24: #{decoder_upsample_block.2} parent=5 // pred_fallthru
      _
    %p164 = scmp.le.s32.totalorder 1, %s11
    %p165 = scmp.lt.s32.totalorder %s11, 3
    %p166 = pnand %p164, %p165
    %p167 = pneg %p166
    // Predicated region
    $region29: #{decoder_upsample_block.2} parent=5 // pred_check
      _
    $region30: #{decoder_upsample_block.2} parent=5 // pred_check_branch
      %169 = sbr.rel (%p166) target = $region32
    $region31: #{decoder_upsample_block.2} parent=5 // pred_region
      %s170 = ssub.s32 %s11, 1
      %p171 = scmp.lt.s32.totalorder %s16, 1
      %s172 = scalar_select %p171, %s16, 1
      %s173 = smul.addr %s172, 20
      %s174 = smul.addr %s173, 8
      %s175 = scalar_lea.vmem %s0, %s174
      %p176 = pneg %p37
      %p177 = pneg %p34
      %p178 = pneg %p58
      %p179 = pneg %p55
      %p180 = pneg %p79
      %p181 = pneg %p76
      %p182 = pneg %p105
      %p183 = pneg %p102
      %p184 = scmp.lt.s32.totalorder %s16, 1
      %s185 = scalar_select %p184, %s16, 1
      %s186 = smul.addr %s185, 8
      %s187 = smul.addr %s186, 8
      %s188 = scalar_lea.vmem %s3, %s187
      %p189 = pneg %p131
      %p190 = pneg %p128
      %p191 = scmp.lt.s32.totalorder %s16, 1
      %s192 = scalar_select %p191, %s16, 1
      %s193 = smul.addr %s192, 2
      %s194 = scalar_lea.vmem %s4, %s193
      %p195 = scmp.lt.s32.totalorder %s16, 1
      %s196 = scalar_select %p195, %s16, 1
      %s197 = smul.addr %s196, 20
      %s198 = smul.addr %s197, 8
      %s199 = scalar_lea.vmem %s0, %s198
      %p200 = scmp.lt.s32.totalorder %s16, 1
      %s201 = scalar_select %p200, %s16, 1
      %s202 = smul.addr %s201, 8
      %s203 = smul.addr %s202, 8
      %s204 = scalar_lea.vmem %s3, %s203
      %p205 = scmp.lt.s32.totalorder %s16, 1
      %s206 = scalar_select %p205, %s16, 1
      %s207 = smul.addr %s206, 2
      %s208 = scalar_lea.vmem %s4, %s207
      %v209 = vld [vmem:[%s199] sm:$0xff]
      %v210 = vld [vmem:[%s199 + $0x10] sm:$0xff]
      %v211 = vld [vmem:[%s199 + $0x20] sm:$0xff]
      %v212 = vld [vmem:[%s199 + $0x30] sm:$0xff]
      %v213 = vld [vmem:[%s199 + $0x40] sm:$0xff]
      %v214 = vld [vmem:[%s199 + $0x50] sm:$0xff]
      %v215 = vld [vmem:[%s199 + $0x60] sm:$0xff]
      %v216 = vld [vmem:[%s199 + $0x70] sm:$0xff]
      %v217 = vld [vmem:[%s1] sm:$0xff]
      %v218 = vld [vmem:[%s1 + $0x8] sm:$0xff]
      %v219 = vld [vmem:[%s1 + $0x10] sm:$0xff]
      %v220 = vld [vmem:[%s1 + $0x18] sm:$0xff]
      %v221 = vld [vmem:[%s1 + $0x20] sm:$0xff]
      %v222 = vld [vmem:[%s199 + $0x1] sm:$0xff]
      %v223 = vld [vmem:[%s199 + $0x11] sm:$0xff]
      %v224 = vld [vmem:[%s199 + $0x21] sm:$0xff]
      %v225 = vld [vmem:[%s199 + $0x31] sm:$0xff]
      %v226 = vld [vmem:[%s199 + $0x41] sm:$0xff]
      %v227 = vld [vmem:[%s199 + $0x51] sm:$0xff]
      %v228 = vld [vmem:[%s199 + $0x61] sm:$0xff]
      %v229 = vld [vmem:[%s199 + $0x71] sm:$0xff]
      %s230 = scalar_lea.vmem %s1, 40
      %v231 = vld [vmem:[%s230] sm:$0xff]
      %v232 = vld [vmem:[%s230 + $0x8] sm:$0xff]
      %v233 = vld [vmem:[%s230 + $0x10] sm:$0xff]
      %v234 = vld [vmem:[%s230 + $0x18] sm:$0xff]
      %v235 = vld [vmem:[%s230 + $0x20] sm:$0xff]
      %vm236 = vcmask 326656
      %v238 = vsel %vm236, %v222, 0
      %v241 = vsel %vm236, %v223, 0
      %v244 = vsel %vm236, %v224, 0
      %v247 = vsel %vm236, %v225, 0
      %v250 = vsel %vm236, %v226, 0
      %v253 = vsel %vm236, %v227, 0
      %v256 = vsel %vm236, %v228, 0
      %v259 = vsel %vm236, %v229, 0
      %261 = vmatprep.subr.mxu0 0.0
      %262 = vmatpush1.msra.mxu0 0.0
      %263 = vmatprep.subr.mxu0 0.0
      %264 = vmatpush1.msra.mxu0 0.0
      %265 = vmatprep.subr.mxu0 0.0
      %266 = vmatpush1.msra.mxu0 0.0
      %267 = vmatprep.subr.mxu0 0.0
      %268 = vmatpush1.msra.mxu0 0.0
      %269 = vmatprep.subr.mxu0 0.0
      %270 = vmatpush1.msra.mxu0 0.0
      %271 = vmatprep.subr.mxu0 0.0
      %272 = vmatpush1.msra.mxu0 0.0
      %273 = vmatprep.subr.mxu0 0.0
      %274 = vmatpush1.msra.mxu0 0.0
      %275 = vmatprep.subr.mxu0 0.0
      %276 = vmatpush1.msra.mxu0 0.0
      %277 = vmatprep.subr.mxu0 0.0
      %278 = vmatpush1.msra.mxu0 0.0
      %279 = vmatprep.subr.mxu0 0.0
      %280 = vmatpush1.msra.mxu0 0.0
      %281 = vmatprep.subr.mxu0 0.0
      %282 = vmatpush1.msra.mxu0 0.0
      %283 = vmatprep.subr.mxu0 0.0
      %284 = vmatpush1.msra.mxu0 %v235
      %285 = vmatprep.subr.mxu0 0.0
      %286 = vmatpush1.msra.mxu0 %v234
      %287 = vmatprep.subr.mxu0 0.0
      %288 = vmatpush1.msra.mxu0 %v233
      %289 = vmatprep.subr.mxu0 0.0
      %290 = vmatpush1.msra.mxu0 %v232
      %291 = vmatprep.subr.mxu0 0.0
      %292 = vmatpush1.msra.mxu0 %v231
      %293 = vmatprep.subr.mxu0 0.0
      %294 = vmatpush2.msra.mxu0 0.0
      %295 = vmatprep.subr.mxu0 0.0
      %296 = vmatpush2.msra.mxu0 0.0
      %297 = vmatprep.subr.mxu0 0.0
      %298 = vmatpush2.msra.mxu0 0.0
      %299 = vmatprep.subr.mxu0 0.0
      %300 = vmatpush2.msra.mxu0 0.0
      %301 = vmatprep.subr.mxu0 0.0
      %302 = vmatpush2.msra.mxu0 0.0
      %303 = vmatprep.subr.mxu0 0.0
      %304 = vmatpush2.msra.mxu0 0.0
      %305 = vmatprep.subr.mxu0 0.0
      %306 = vmatpush2.msra.mxu0 0.0
      %307 = vmatprep.subr.mxu0 0.0
      %308 = vmatpush2.msra.mxu0 0.0
      %309 = vmatprep.subr.mxu0 0.0
      %310 = vmatpush2.msra.mxu0 0.0
      %311 = vmatprep.subr.mxu0 0.0
      %312 = vmatpush2.msra.mxu0 0.0
      %313 = vmatprep.subr.mxu0 0.0
      %314 = vmatpush2.msra.mxu0 0.0
      %315 = vmatprep.subr.mxu0 0.0
      %316 = vmatpush2.msra.mxu0 0.0
      %317 = vmatprep.subr.mxu0 0.0
      %318 = vmatpush2.msra.mxu0 0.0
      %319 = vmatprep.subr.mxu0 0.0
      %320 = vmatpush2.msra.mxu0 0.0
      %321 = vmatprep.subr.mxu0 0.0
      %322 = vmatpush2.msra.mxu0 0.0
      %323 = vmatprep.subr.mxu0 0.0
      %324 = vmatpush2.msra.mxu0 0.0
      %325 = vmatprep.mubr.f32.mxu0 0.0
      %326 = vmatmul.mubr.f32.gmra.mxu0 %v238
      %v327 = vpop.f32.mrf.mxu0
      %v328 = vadd.f32 0.0, %v327
      %v329 = vpop.f32.mrf.mxu0
      %330 = vmatprep.mubr.f32.mxu0 0.0
      %331 = vmatmul.mubr.f32.gmra.mxu0 %v241
      %v332 = vpop.f32.mrf.mxu0
      %v333 = vadd.f32 0.0, %v332
      %v334 = vpop.f32.mrf.mxu0
      %335 = vmatprep.mubr.f32.mxu0 0.0
      %336 = vmatmul.mubr.f32.gmra.mxu0 %v244
      %v337 = vpop.f32.mrf.mxu0
      %v338 = vadd.f32 0.0, %v337
      %v339 = vpop.f32.mrf.mxu0
      %340 = vmatprep.mubr.f32.mxu0 0.0
      %341 = vmatmul.mubr.f32.gmra.mxu0 %v247
      %v342 = vpop.f32.mrf.mxu0
      %v343 = vadd.f32 0.0, %v342
      %v344 = vpop.f32.mrf.mxu0
      %345 = vmatprep.mubr.f32.mxu0 0.0
      %346 = vmatmul.mubr.f32.gmra.mxu0 %v250
      %v347 = vpop.f32.mrf.mxu0
      %v348 = vadd.f32 0.0, %v347
      %v349 = vpop.f32.mrf.mxu0
      %350 = vmatprep.mubr.f32.mxu0 0.0
      %351 = vmatmul.mubr.f32.gmra.mxu0 %v253
      %v352 = vpop.f32.mrf.mxu0
      %v353 = vadd.f32 0.0, %v352
      %v354 = vpop.f32.mrf.mxu0
      %355 = vmatprep.mubr.f32.mxu0 0.0
      %356 = vmatmul.mubr.f32.gmra.mxu0 %v256
      %v357 = vpop.f32.mrf.mxu0
      %v358 = vadd.f32 0.0, %v357
      %v359 = vpop.f32.mrf.mxu0
      %360 = vmatprep.mubr.f32.mxu0 0.0
      %361 = vmatmul.mubr.f32.gmra.mxu0 %v259
      %v362 = vpop.f32.mrf.mxu0
      %v363 = vadd.f32 0.0, %v362
      %v364 = vpop.f32.mrf.mxu0
      %365 = vdwg.mxu0
      %v367 = vsel %vm236, %v209, 0
      %v370 = vsel %vm236, %v210, 0
      %v373 = vsel %vm236, %v211, 0
      %v376 = vsel %vm236, %v212, 0
      %v379 = vsel %vm236, %v213, 0
      %v382 = vsel %vm236, %v214, 0
      %v385 = vsel %vm236, %v215, 0
      %v388 = vsel %vm236, %v216, 0
      %390 = vmatprep.subr.mxu0 0.0
      %391 = vmatpush1.msra.mxu0 0.0
      %392 = vmatprep.subr.mxu0 0.0
      %393 = vmatpush1.msra.mxu0 0.0
      %394 = vmatprep.subr.mxu0 0.0
      %395 = vmatpush1.msra.mxu0 0.0
      %396 = vmatprep.subr.mxu0 0.0
      %397 = vmatpush1.msra.mxu0 0.0
      %398 = vmatprep.subr.mxu0 0.0
      %399 = vmatpush1.msra.mxu0 0.0
      %400 = vmatprep.subr.mxu0 0.0
      %401 = vmatpush1.msra.mxu0 0.0
      %402 = vmatprep.subr.mxu0 0.0
      %403 = vmatpush1.msra.mxu0 0.0
      %404 = vmatprep.subr.mxu0 0.0
      %405 = vmatpush1.msra.mxu0 0.0
      %406 = vmatprep.subr.mxu0 0.0
      %407 = vmatpush1.msra.mxu0 0.0
      %408 = vmatprep.subr.mxu0 0.0
      %409 = vmatpush1.msra.mxu0 0.0
      %410 = vmatprep.subr.mxu0 0.0
      %411 = vmatpush1.msra.mxu0 0.0
      %412 = vmatprep.subr.mxu0 0.0
      %413 = vmatpush1.msra.mxu0 %v221
      %414 = vmatprep.subr.mxu0 0.0
      %415 = vmatpush1.msra.mxu0 %v220
      %416 = vmatprep.subr.mxu0 0.0
      %417 = vmatpush1.msra.mxu0 %v219
      %418 = vmatprep.subr.mxu0 0.0
      %419 = vmatpush1.msra.mxu0 %v218
      %420 = vmatprep.subr.mxu0 0.0
      %421 = vmatpush1.msra.mxu0 %v217
      %422 = vmatprep.subr.mxu0 0.0
      %423 = vmatpush2.msra.mxu0 0.0
      %424 = vmatprep.subr.mxu0 0.0
      %425 = vmatpush2.msra.mxu0 0.0
      %426 = vmatprep.subr.mxu0 0.0
      %427 = vmatpush2.msra.mxu0 0.0
      %428 = vmatprep.subr.mxu0 0.0
      %429 = vmatpush2.msra.mxu0 0.0
      %430 = vmatprep.subr.mxu0 0.0
      %431 = vmatpush2.msra.mxu0 0.0
      %432 = vmatprep.subr.mxu0 0.0
      %433 = vmatpush2.msra.mxu0 0.0
      %434 = vmatprep.subr.mxu0 0.0
      %435 = vmatpush2.msra.mxu0 0.0
      %436 = vmatprep.subr.mxu0 0.0
      %437 = vmatpush2.msra.mxu0 0.0
      %438 = vmatprep.subr.mxu0 0.0
      %439 = vmatpush2.msra.mxu0 0.0
      %440 = vmatprep.subr.mxu0 0.0
      %441 = vmatpush2.msra.mxu0 0.0
      %442 = vmatprep.subr.mxu0 0.0
      %443 = vmatpush2.msra.mxu0 0.0
      %444 = vmatprep.subr.mxu0 0.0
      %445 = vmatpush2.msra.mxu0 0.0
      %446 = vmatprep.subr.mxu0 0.0
      %447 = vmatpush2.msra.mxu0 0.0
      %448 = vmatprep.subr.mxu0 0.0
      %449 = vmatpush2.msra.mxu0 0.0
      %450 = vmatprep.subr.mxu0 0.0
      %451 = vmatpush2.msra.mxu0 0.0
      %452 = vmatprep.subr.mxu0 0.0
      %453 = vmatpush2.msra.mxu0 0.0
      %454 = vmatprep.mubr.f32.mxu0 0.0
      %455 = vmatmul.mubr.f32.gmra.mxu0 %v367
      %v456 = vpop.f32.mrf.mxu0
      %v457 = vadd.f32 %v328, %v456
      %v458 = vpop.f32.mrf.mxu0
      %459 = vmatprep.mubr.f32.mxu0 0.0
      %460 = vmatmul.mubr.f32.gmra.mxu0 %v370
      %v461 = vpop.f32.mrf.mxu0
      %v462 = vadd.f32 %v333, %v461
      %v463 = vpop.f32.mrf.mxu0
      %464 = vmatprep.mubr.f32.mxu0 0.0
      %465 = vmatmul.mubr.f32.gmra.mxu0 %v373
      %v466 = vpop.f32.mrf.mxu0
      %v467 = vadd.f32 %v338, %v466
      %v468 = vpop.f32.mrf.mxu0
      %469 = vmatprep.mubr.f32.mxu0 0.0
      %470 = vmatmul.mubr.f32.gmra.mxu0 %v376
      %v471 = vpop.f32.mrf.mxu0
      %v472 = vadd.f32 %v343, %v471
      %v473 = vpop.f32.mrf.mxu0
      %474 = vmatprep.mubr.f32.mxu0 0.0
      %475 = vmatmul.mubr.f32.gmra.mxu0 %v379
      %v476 = vpop.f32.mrf.mxu0
      %v477 = vadd.f32 %v348, %v476
      %v478 = vpop.f32.mrf.mxu0
      %479 = vmatprep.mubr.f32.mxu0 0.0
      %480 = vmatmul.mubr.f32.gmra.mxu0 %v382
      %v481 = vpop.f32.mrf.mxu0
      %v482 = vadd.f32 %v353, %v481
      %v483 = vpop.f32.mrf.mxu0
      %484 = vmatprep.mubr.f32.mxu0 0.0
      %485 = vmatmul.mubr.f32.gmra.mxu0 %v385
      %v486 = vpop.f32.mrf.mxu0
      %v487 = vadd.f32 %v358, %v486
      %v488 = vpop.f32.mrf.mxu0
      %489 = vmatprep.mubr.f32.mxu0 0.0
      %490 = vmatmul.mubr.f32.gmra.mxu0 %v388
      %v491 = vpop.f32.mrf.mxu0
      %v492 = vadd.f32 %v363, %v491
      %v493 = vpop.f32.mrf.mxu0
      %494 = vdwg.mxu0
      %v495 = vld [vmem:[%s199 + $0x2] sm:$0xff]
      %v496 = vld [vmem:[%s199 + $0x12] sm:$0xff]
      %v497 = vld [vmem:[%s199 + $0x22] sm:$0xff]
      %v498 = vld [vmem:[%s199 + $0x32] sm:$0xff]
      %v499 = vld [vmem:[%s199 + $0x42] sm:$0xff]
      %v500 = vld [vmem:[%s199 + $0x52] sm:$0xff]
      %v501 = vld [vmem:[%s199 + $0x62] sm:$0xff]
      %v502 = vld [vmem:[%s199 + $0x72] sm:$0xff]
      %s503 = scalar_lea.vmem %s1, 80
      %v504 = vld [vmem:[%s503] sm:$0xff]
      %v505 = vld [vmem:[%s503 + $0x8] sm:$0xff]
      %v506 = vld [vmem:[%s503 + $0x10] sm:$0xff]
      %v507 = vld [vmem:[%s503 + $0x18] sm:$0xff]
      %v508 = vld [vmem:[%s503 + $0x20] sm:$0xff]
      %v510 = vsel %vm236, %v495, 0
      %v513 = vsel %vm236, %v496, 0
      %v516 = vsel %vm236, %v497, 0
      %v519 = vsel %vm236, %v498, 0
      %v522 = vsel %vm236, %v499, 0
      %v525 = vsel %vm236, %v500, 0
      %v528 = vsel %vm236, %v501, 0
      %v531 = vsel %vm236, %v502, 0
      %533 = vmatprep.subr.mxu0 0.0
      %534 = vmatpush1.msra.mxu0 0.0
      %535 = vmatprep.subr.mxu0 0.0
      %536 = vmatpush1.msra.mxu0 0.0
      %537 = vmatprep.subr.mxu0 0.0
      %538 = vmatpush1.msra.mxu0 0.0
      %539 = vmatprep.subr.mxu0 0.0
      %540 = vmatpush1.msra.mxu0 0.0
      %541 = vmatprep.subr.mxu0 0.0
      %542 = vmatpush1.msra.mxu0 0.0
      %543 = vmatprep.subr.mxu0 0.0
      %544 = vmatpush1.msra.mxu0 0.0
      %545 = vmatprep.subr.mxu0 0.0
      %546 = vmatpush1.msra.mxu0 0.0
      %547 = vmatprep.subr.mxu0 0.0
      %548 = vmatpush1.msra.mxu0 0.0
      %549 = vmatprep.subr.mxu0 0.0
      %550 = vmatpush1.msra.mxu0 0.0
      %551 = vmatprep.subr.mxu0 0.0
      %552 = vmatpush1.msra.mxu0 0.0
      %553 = vmatprep.subr.mxu0 0.0
      %554 = vmatpush1.msra.mxu0 0.0
      %555 = vmatprep.subr.mxu0 0.0
      %556 = vmatpush1.msra.mxu0 %v508
      %557 = vmatprep.subr.mxu0 0.0
      %558 = vmatpush1.msra.mxu0 %v507
      %559 = vmatprep.subr.mxu0 0.0
      %560 = vmatpush1.msra.mxu0 %v506
      %561 = vmatprep.subr.mxu0 0.0
      %562 = vmatpush1.msra.mxu0 %v505
      %563 = vmatprep.subr.mxu0 0.0
      %564 = vmatpush1.msra.mxu0 %v504
      %565 = vmatprep.subr.mxu0 0.0
      %566 = vmatpush2.msra.mxu0 0.0
      %567 = vmatprep.subr.mxu0 0.0
      %568 = vmatpush2.msra.mxu0 0.0
      %569 = vmatprep.subr.mxu0 0.0
      %570 = vmatpush2.msra.mxu0 0.0
      %571 = vmatprep.subr.mxu0 0.0
      %572 = vmatpush2.msra.mxu0 0.0
      %573 = vmatprep.subr.mxu0 0.0
      %574 = vmatpush2.msra.mxu0 0.0
      %575 = vmatprep.subr.mxu0 0.0
      %576 = vmatpush2.msra.mxu0 0.0
      %577 = vmatprep.subr.mxu0 0.0
      %578 = vmatpush2.msra.mxu0 0.0
      %579 = vmatprep.subr.mxu0 0.0
      %580 = vmatpush2.msra.mxu0 0.0
      %581 = vmatprep.subr.mxu0 0.0
      %582 = vmatpush2.msra.mxu0 0.0
      %583 = vmatprep.subr.mxu0 0.0
      %584 = vmatpush2.msra.mxu0 0.0
      %585 = vmatprep.subr.mxu0 0.0
      %586 = vmatpush2.msra.mxu0 0.0
      %587 = vmatprep.subr.mxu0 0.0
      %588 = vmatpush2.msra.mxu0 0.0
      %589 = vmatprep.subr.mxu0 0.0
      %590 = vmatpush2.msra.mxu0 0.0
      %591 = vmatprep.subr.mxu0 0.0
      %592 = vmatpush2.msra.mxu0 0.0
      %593 = vmatprep.subr.mxu0 0.0
      %594 = vmatpush2.msra.mxu0 0.0
      %595 = vmatprep.subr.mxu0 0.0
      %596 = vmatpush2.msra.mxu0 0.0
      %597 = vmatprep.mubr.f32.mxu0 0.0
      %598 = vmatmul.mubr.f32.gmra.mxu0 %v510
      %v599 = vpop.f32.mrf.mxu0
      %v600 = vadd.f32 0.0, %v599
      %v601 = vpop.f32.mrf.mxu0
      %602 = vmatprep.mubr.f32.mxu0 0.0
      %603 = vmatmul.mubr.f32.gmra.mxu0 %v513
      %v604 = vpop.f32.mrf.mxu0
      %v605 = vadd.f32 0.0, %v604
      %v606 = vpop.f32.mrf.mxu0
      %607 = vmatprep.mubr.f32.mxu0 0.0
      %608 = vmatmul.mubr.f32.gmra.mxu0 %v516
      %v609 = vpop.f32.mrf.mxu0
      %v610 = vadd.f32 0.0, %v609
      %v611 = vpop.f32.mrf.mxu0
      %612 = vmatprep.mubr.f32.mxu0 0.0
      %613 = vmatmul.mubr.f32.gmra.mxu0 %v519
      %v614 = vpop.f32.mrf.mxu0
      %v615 = vadd.f32 0.0, %v614
      %v616 = vpop.f32.mrf.mxu0
      %617 = vmatprep.mubr.f32.mxu0 0.0
      %618 = vmatmul.mubr.f32.gmra.mxu0 %v522
      %v619 = vpop.f32.mrf.mxu0
      %v620 = vadd.f32 0.0, %v619
      %v621 = vpop.f32.mrf.mxu0
      %622 = vmatprep.mubr.f32.mxu0 0.0
      %623 = vmatmul.mubr.f32.gmra.mxu0 %v525
      %v624 = vpop.f32.mrf.mxu0
      %v625 = vadd.f32 0.0, %v624
      %v626 = vpop.f32.mrf.mxu0
      %627 = vmatprep.mubr.f32.mxu0 0.0
      %628 = vmatmul.mubr.f32.gmra.mxu0 %v528
      %v629 = vpop.f32.mrf.mxu0
      %v630 = vadd.f32 0.0, %v629
      %v631 = vpop.f32.mrf.mxu0
      %632 = vmatprep.mubr.f32.mxu0 0.0
      %633 = vmatmul.mubr.f32.gmra.mxu0 %v531
      %v634 = vpop.f32.mrf.mxu0
      %v635 = vadd.f32 0.0, %v634
      %v636 = vpop.f32.mrf.mxu0
      %637 = vdwg.mxu0
      %v638 = vadd.f32 %v457, %v600
      %v639 = vadd.f32 %v462, %v605
      %v640 = vadd.f32 %v467, %v610
      %v641 = vadd.f32 %v472, %v615
      %v642 = vadd.f32 %v477, %v620
      %v643 = vadd.f32 %v482, %v625
      %v644 = vadd.f32 %v487, %v630
      %v645 = vadd.f32 %v492, %v635
      %s646 = scalar_lea.vmem %s199, 16
      %v647 = vld [vmem:[%s646] sm:$0xff]
      %v648 = vld [vmem:[%s646 + $0x10] sm:$0xff]
      %v649 = vld [vmem:[%s646 + $0x20] sm:$0xff]
      %v650 = vld [vmem:[%s646 + $0x30] sm:$0xff]
      %v651 = vld [vmem:[%s646 + $0x40] sm:$0xff]
      %v652 = vld [vmem:[%s646 + $0x50] sm:$0xff]
      %v653 = vld [vmem:[%s646 + $0x60] sm:$0xff]
      %v654 = vld [vmem:[%s646 + $0x70] sm:$0xff]
      %s655 = scalar_lea.vmem %s1, 120
      %v656 = vld [vmem:[%s655] sm:$0xff]
      %v657 = vld [vmem:[%s655 + $0x8] sm:$0xff]
      %v658 = vld [vmem:[%s655 + $0x10] sm:$0xff]
      %v659 = vld [vmem:[%s655 + $0x18] sm:$0xff]
      %v660 = vld [vmem:[%s655 + $0x20] sm:$0xff]
      %v662 = vsel %vm236, %v647, 0
      %v665 = vsel %vm236, %v648, 0
      %v668 = vsel %vm236, %v649, 0
      %v671 = vsel %vm236, %v650, 0
      %v674 = vsel %vm236, %v651, 0
      %v677 = vsel %vm236, %v652, 0
      %v680 = vsel %vm236, %v653, 0
      %v683 = vsel %vm236, %v654, 0
      %685 = vmatprep.subr.mxu0 0.0
      %686 = vmatpush1.msra.mxu0 0.0
      %687 = vmatprep.subr.mxu0 0.0
      %688 = vmatpush1.msra.mxu0 0.0
      %689 = vmatprep.subr.mxu0 0.0
      %690 = vmatpush1.msra.mxu0 0.0
      %691 = vmatprep.subr.mxu0 0.0
      %692 = vmatpush1.msra.mxu0 0.0
      %693 = vmatprep.subr.mxu0 0.0
      %694 = vmatpush1.msra.mxu0 0.0
      %695 = vmatprep.subr.mxu0 0.0
      %696 = vmatpush1.msra.mxu0 0.0
      %697 = vmatprep.subr.mxu0 0.0
      %698 = vmatpush1.msra.mxu0 0.0
      %699 = vmatprep.subr.mxu0 0.0
      %700 = vmatpush1.msra.mxu0 0.0
      %701 = vmatprep.subr.mxu0 0.0
      %702 = vmatpush1.msra.mxu0 0.0
      %703 = vmatprep.subr.mxu0 0.0
      %704 = vmatpush1.msra.mxu0 0.0
      %705 = vmatprep.subr.mxu0 0.0
      %706 = vmatpush1.msra.mxu0 0.0
      %707 = vmatprep.subr.mxu0 0.0
      %708 = vmatpush1.msra.mxu0 %v660
      %709 = vmatprep.subr.mxu0 0.0
      %710 = vmatpush1.msra.mxu0 %v659
      %711 = vmatprep.subr.mxu0 0.0
      %712 = vmatpush1.msra.mxu0 %v658
      %713 = vmatprep.subr.mxu0 0.0
      %714 = vmatpush1.msra.mxu0 %v657
      %715 = vmatprep.subr.mxu0 0.0
      %716 = vmatpush1.msra.mxu0 %v656
      %717 = vmatprep.subr.mxu0 0.0
      %718 = vmatpush2.msra.mxu0 0.0
      %719 = vmatprep.subr.mxu0 0.0
      %720 = vmatpush2.msra.mxu0 0.0
      %721 = vmatprep.subr.mxu0 0.0
      %722 = vmatpush2.msra.mxu0 0.0
      %723 = vmatprep.subr.mxu0 0.0
      %724 = vmatpush2.msra.mxu0 0.0
      %725 = vmatprep.subr.mxu0 0.0
      %726 = vmatpush2.msra.mxu0 0.0
      %727 = vmatprep.subr.mxu0 0.0
      %728 = vmatpush2.msra.mxu0 0.0
      %729 = vmatprep.subr.mxu0 0.0
      %730 = vmatpush2.msra.mxu0 0.0
      %731 = vmatprep.subr.mxu0 0.0
      %732 = vmatpush2.msra.mxu0 0.0
      %733 = vmatprep.subr.mxu0 0.0
      %734 = vmatpush2.msra.mxu0 0.0
      %735 = vmatprep.subr.mxu0 0.0
      %736 = vmatpush2.msra.mxu0 0.0
      %737 = vmatprep.subr.mxu0 0.0
      %738 = vmatpush2.msra.mxu0 0.0
      %739 = vmatprep.subr.mxu0 0.0
      %740 = vmatpush2.msra.mxu0 0.0
      %741 = vmatprep.subr.mxu0 0.0
      %742 = vmatpush2.msra.mxu0 0.0
      %743 = vmatprep.subr.mxu0 0.0
      %744 = vmatpush2.msra.mxu0 0.0
      %745 = vmatprep.subr.mxu0 0.0
      %746 = vmatpush2.msra.mxu0 0.0
      %747 = vmatprep.subr.mxu0 0.0
      %748 = vmatpush2.msra.mxu0 0.0
      %749 = vmatprep.mubr.f32.mxu0 0.0
      %750 = vmatmul.mubr.f32.gmra.mxu0 %v662
      %v751 = vpop.f32.mrf.mxu0
      %v752 = vadd.f32 0.0, %v751
      %v753 = vpop.f32.mrf.mxu0
      %754 = vmatprep.mubr.f32.mxu0 0.0
      %755 = vmatmul.mubr.f32.gmra.mxu0 %v665
      %v756 = vpop.f32.mrf.mxu0
      %v757 = vadd.f32 0.0, %v756
      %v758 = vpop.f32.mrf.mxu0
      %759 = vmatprep.mubr.f32.mxu0 0.0
      %760 = vmatmul.mubr.f32.gmra.mxu0 %v668
      %v761 = vpop.f32.mrf.mxu0
      %v762 = vadd.f32 0.0, %v761
      %v763 = vpop.f32.mrf.mxu0
      %764 = vmatprep.mubr.f32.mxu0 0.0
      %765 = vmatmul.mubr.f32.gmra.mxu0 %v671
      %v766 = vpop.f32.mrf.mxu0
      %v767 = vadd.f32 0.0, %v766
      %v768 = vpop.f32.mrf.mxu0
      %769 = vmatprep.mubr.f32.mxu0 0.0
      %770 = vmatmul.mubr.f32.gmra.mxu0 %v674
      %v771 = vpop.f32.mrf.mxu0
      %v772 = vadd.f32 0.0, %v771
      %v773 = vpop.f32.mrf.mxu0
      %774 = vmatprep.mubr.f32.mxu0 0.0
      %775 = vmatmul.mubr.f32.gmra.mxu0 %v677
      %v776 = vpop.f32.mrf.mxu0
      %v777 = vadd.f32 0.0, %v776
      %v778 = vpop.f32.mrf.mxu0
      %779 = vmatprep.mubr.f32.mxu0 0.0
      %780 = vmatmul.mubr.f32.gmra.mxu0 %v680
      %v781 = vpop.f32.mrf.mxu0
      %v782 = vadd.f32 0.0, %v781
      %v783 = vpop.f32.mrf.mxu0
      %784 = vmatprep.mubr.f32.mxu0 0.0
      %785 = vmatmul.mubr.f32.gmra.mxu0 %v683
      %v786 = vpop.f32.mrf.mxu0
      %v787 = vadd.f32 0.0, %v786
      %v788 = vpop.f32.mrf.mxu0
      %789 = vdwg.mxu0
      %v790 = vadd.f32 %v638, %v752
      %v791 = vadd.f32 %v639, %v757
      %v792 = vadd.f32 %v640, %v762
      %v793 = vadd.f32 %v641, %v767
      %v794 = vadd.f32 %v642, %v772
      %v795 = vadd.f32 %v643, %v777
      %v796 = vadd.f32 %v644, %v782
      %v797 = vadd.f32 %v645, %v787
      %v798 = vld [vmem:[%s646 + $0x1] sm:$0xff]
      %v799 = vld [vmem:[%s646 + $0x11] sm:$0xff]
      %v800 = vld [vmem:[%s646 + $0x21] sm:$0xff]
      %v801 = vld [vmem:[%s646 + $0x31] sm:$0xff]
      %v802 = vld [vmem:[%s646 + $0x41] sm:$0xff]
      %v803 = vld [vmem:[%s646 + $0x51] sm:$0xff]
      %v804 = vld [vmem:[%s646 + $0x61] sm:$0xff]
      %v805 = vld [vmem:[%s646 + $0x71] sm:$0xff]
      %s806 = scalar_lea.vmem %s1, 160
      %v807 = vld [vmem:[%s806] sm:$0xff]
      %v808 = vld [vmem:[%s806 + $0x8] sm:$0xff]
      %v809 = vld [vmem:[%s806 + $0x10] sm:$0xff]
      %v810 = vld [vmem:[%s806 + $0x18] sm:$0xff]
      %v811 = vld [vmem:[%s806 + $0x20] sm:$0xff]
      %v813 = vsel %vm236, %v798, 0
      %v816 = vsel %vm236, %v799, 0
      %v819 = vsel %vm236, %v800, 0
      %v822 = vsel %vm236, %v801, 0
      %v825 = vsel %vm236, %v802, 0
      %v828 = vsel %vm236, %v803, 0
      %v831 = vsel %vm236, %v804, 0
      %v834 = vsel %vm236, %v805, 0
      %836 = vmatprep.subr.mxu0 0.0
      %837 = vmatpush1.msra.mxu0 0.0
      %838 = vmatprep.subr.mxu0 0.0
      %839 = vmatpush1.msra.mxu0 0.0
      %840 = vmatprep.subr.mxu0 0.0
      %841 = vmatpush1.msra.mxu0 0.0
      %842 = vmatprep.subr.mxu0 0.0
      %843 = vmatpush1.msra.mxu0 0.0
      %844 = vmatprep.subr.mxu0 0.0
      %845 = vmatpush1.msra.mxu0 0.0
      %846 = vmatprep.subr.mxu0 0.0
      %847 = vmatpush1.msra.mxu0 0.0
      %848 = vmatprep.subr.mxu0 0.0
      %849 = vmatpush1.msra.mxu0 0.0
      %850 = vmatprep.subr.mxu0 0.0
      %851 = vmatpush1.msra.mxu0 0.0
      %852 = vmatprep.subr.mxu0 0.0
      %853 = vmatpush1.msra.mxu0 0.0
      %854 = vmatprep.subr.mxu0 0.0
      %855 = vmatpush1.msra.mxu0 0.0
      %856 = vmatprep.subr.mxu0 0.0
      %857 = vmatpush1.msra.mxu0 0.0
      %858 = vmatprep.subr.mxu0 0.0
      %859 = vmatpush1.msra.mxu0 %v811
      %860 = vmatprep.subr.mxu0 0.0
      %861 = vmatpush1.msra.mxu0 %v810
      %862 = vmatprep.subr.mxu0 0.0
      %863 = vmatpush1.msra.mxu0 %v809
      %864 = vmatprep.subr.mxu0 0.0
      %865 = vmatpush1.msra.mxu0 %v808
      %866 = vmatprep.subr.mxu0 0.0
      %867 = vmatpush1.msra.mxu0 %v807
      %868 = vmatprep.subr.mxu0 0.0
      %869 = vmatpush2.msra.mxu0 0.0
      %870 = vmatprep.subr.mxu0 0.0
      %871 = vmatpush2.msra.mxu0 0.0
      %872 = vmatprep.subr.mxu0 0.0
      %873 = vmatpush2.msra.mxu0 0.0
      %874 = vmatprep.subr.mxu0 0.0
      %875 = vmatpush2.msra.mxu0 0.0
      %876 = vmatprep.subr.mxu0 0.0
      %877 = vmatpush2.msra.mxu0 0.0
      %878 = vmatprep.subr.mxu0 0.0
      %879 = vmatpush2.msra.mxu0 0.0
      %880 = vmatprep.subr.mxu0 0.0
      %881 = vmatpush2.msra.mxu0 0.0
      %882 = vmatprep.subr.mxu0 0.0
      %883 = vmatpush2.msra.mxu0 0.0
      %884 = vmatprep.subr.mxu0 0.0
      %885 = vmatpush2.msra.mxu0 0.0
      %886 = vmatprep.subr.mxu0 0.0
      %887 = vmatpush2.msra.mxu0 0.0
      %888 = vmatprep.subr.mxu0 0.0
      %889 = vmatpush2.msra.mxu0 0.0
      %890 = vmatprep.subr.mxu0 0.0
      %891 = vmatpush2.msra.mxu0 0.0
      %892 = vmatprep.subr.mxu0 0.0
      %893 = vmatpush2.msra.mxu0 0.0
      %894 = vmatprep.subr.mxu0 0.0
      %895 = vmatpush2.msra.mxu0 0.0
      %896 = vmatprep.subr.mxu0 0.0
      %897 = vmatpush2.msra.mxu0 0.0
      %898 = vmatprep.subr.mxu0 0.0
      %899 = vmatpush2.msra.mxu0 0.0
      %900 = vmatprep.mubr.f32.mxu0 0.0
      %901 = vmatmul.mubr.f32.gmra.mxu0 %v813
      %v902 = vpop.f32.mrf.mxu0
      %v903 = vadd.f32 0.0, %v902
      %v904 = vpop.f32.mrf.mxu0
      %905 = vmatprep.mubr.f32.mxu0 0.0
      %906 = vmatmul.mubr.f32.gmra.mxu0 %v816
      %v907 = vpop.f32.mrf.mxu0
      %v908 = vadd.f32 0.0, %v907
      %v909 = vpop.f32.mrf.mxu0
      %910 = vmatprep.mubr.f32.mxu0 0.0
      %911 = vmatmul.mubr.f32.gmra.mxu0 %v819
      %v912 = vpop.f32.mrf.mxu0
      %v913 = vadd.f32 0.0, %v912
      %v914 = vpop.f32.mrf.mxu0
      %915 = vmatprep.mubr.f32.mxu0 0.0
      %916 = vmatmul.mubr.f32.gmra.mxu0 %v822
      %v917 = vpop.f32.mrf.mxu0
      %v918 = vadd.f32 0.0, %v917
      %v919 = vpop.f32.mrf.mxu0
      %920 = vmatprep.mubr.f32.mxu0 0.0
      %921 = vmatmul.mubr.f32.gmra.mxu0 %v825
      %v922 = vpop.f32.mrf.mxu0
      %v923 = vadd.f32 0.0, %v922
      %v924 = vpop.f32.mrf.mxu0
      %925 = vmatprep.mubr.f32.mxu0 0.0
      %926 = vmatmul.mubr.f32.gmra.mxu0 %v828
      %v927 = vpop.f32.mrf.mxu0
      %v928 = vadd.f32 0.0, %v927
      %v929 = vpop.f32.mrf.mxu0
      %930 = vmatprep.mubr.f32.mxu0 0.0
      %931 = vmatmul.mubr.f32.gmra.mxu0 %v831
      %v932 = vpop.f32.mrf.mxu0
      %v933 = vadd.f32 0.0, %v932
      %v934 = vpop.f32.mrf.mxu0
      %935 = vmatprep.mubr.f32.mxu0 0.0
      %936 = vmatmul.mubr.f32.gmra.mxu0 %v834
      %v937 = vpop.f32.mrf.mxu0
      %v938 = vadd.f32 0.0, %v937
      %v939 = vpop.f32.mrf.mxu0
      %940 = vdwg.mxu0
      %v941 = vadd.f32 %v790, %v903
      %v942 = vadd.f32 %v791, %v908
      %v943 = vadd.f32 %v792, %v913
      %v944 = vadd.f32 %v793, %v918
      %v945 = vadd.f32 %v794, %v923
      %v946 = vadd.f32 %v795, %v928
      %v947 = vadd.f32 %v796, %v933
      %v948 = vadd.f32 %v797, %v938
      %v949 = vld [vmem:[%s646 + $0x2] sm:$0xff]
      %v950 = vld [vmem:[%s646 + $0x12] sm:$0xff]
      %v951 = vld [vmem:[%s646 + $0x22] sm:$0xff]
      %v952 = vld [vmem:[%s646 + $0x32] sm:$0xff]
      %v953 = vld [vmem:[%s646 + $0x42] sm:$0xff]
      %v954 = vld [vmem:[%s646 + $0x52] sm:$0xff]
      %v955 = vld [vmem:[%s646 + $0x62] sm:$0xff]
      %v956 = vld [vmem:[%s646 + $0x72] sm:$0xff]
      %s957 = scalar_lea.vmem %s1, 200
      %v958 = vld [vmem:[%s957] sm:$0xff]
      %v959 = vld [vmem:[%s957 + $0x8] sm:$0xff]
      %v960 = vld [vmem:[%s957 + $0x10] sm:$0xff]
      %v961 = vld [vmem:[%s957 + $0x18] sm:$0xff]
      %v962 = vld [vmem:[%s957 + $0x20] sm:$0xff]
      %v964 = vsel %vm236, %v949, 0
      %v967 = vsel %vm236, %v950, 0
      %v970 = vsel %vm236, %v951, 0
      %v973 = vsel %vm236, %v952, 0
      %v976 = vsel %vm236, %v953, 0
      %v979 = vsel %vm236, %v954, 0
      %v982 = vsel %vm236, %v955, 0
      %v985 = vsel %vm236, %v956, 0
      %987 = vmatprep.subr.mxu0 0.0
      %988 = vmatpush1.msra.mxu0 0.0
      %989 = vmatprep.subr.mxu0 0.0
      %990 = vmatpush1.msra.mxu0 0.0
      %991 = vmatprep.subr.mxu0 0.0
      %992 = vmatpush1.msra.mxu0 0.0
      %993 = vmatprep.subr.mxu0 0.0
      %994 = vmatpush1.msra.mxu0 0.0
      %995 = vmatprep.subr.mxu0 0.0
      %996 = vmatpush1.msra.mxu0 0.0
      %997 = vmatprep.subr.mxu0 0.0
      %998 = vmatpush1.msra.mxu0 0.0
      %999 = vmatprep.subr.mxu0 0.0
      %1000 = vmatpush1.msra.mxu0 0.0
      %1001 = vmatprep.subr.mxu0 0.0
      %1002 = vmatpush1.msra.mxu0 0.0
      %1003 = vmatprep.subr.mxu0 0.0
      %1004 = vmatpush1.msra.mxu0 0.0
      %1005 = vmatprep.subr.mxu0 0.0
      %1006 = vmatpush1.msra.mxu0 0.0
      %1007 = vmatprep.subr.mxu0 0.0
      %1008 = vmatpush1.msra.mxu0 0.0
      %1009 = vmatprep.subr.mxu0 0.0
      %1010 = vmatpush1.msra.mxu0 %v962
      %1011 = vmatprep.subr.mxu0 0.0
      %1012 = vmatpush1.msra.mxu0 %v961
      %1013 = vmatprep.subr.mxu0 0.0
      %1014 = vmatpush1.msra.mxu0 %v960
      %1015 = vmatprep.subr.mxu0 0.0
      %1016 = vmatpush1.msra.mxu0 %v959
      %1017 = vmatprep.subr.mxu0 0.0
      %1018 = vmatpush1.msra.mxu0 %v958
      %1019 = vmatprep.subr.mxu0 0.0
      %1020 = vmatpush2.msra.mxu0 0.0
      %1021 = vmatprep.subr.mxu0 0.0
      %1022 = vmatpush2.msra.mxu0 0.0
      %1023 = vmatprep.subr.mxu0 0.0
      %1024 = vmatpush2.msra.mxu0 0.0
      %1025 = vmatprep.subr.mxu0 0.0
      %1026 = vmatpush2.msra.mxu0 0.0
      %1027 = vmatprep.subr.mxu0 0.0
      %1028 = vmatpush2.msra.mxu0 0.0
      %1029 = vmatprep.subr.mxu0 0.0
      %1030 = vmatpush2.msra.mxu0 0.0
      %1031 = vmatprep.subr.mxu0 0.0
      %1032 = vmatpush2.msra.mxu0 0.0
      %1033 = vmatprep.subr.mxu0 0.0
      %1034 = vmatpush2.msra.mxu0 0.0
      %1035 = vmatprep.subr.mxu0 0.0
      %1036 = vmatpush2.msra.mxu0 0.0
      %1037 = vmatprep.subr.mxu0 0.0
      %1038 = vmatpush2.msra.mxu0 0.0
      %1039 = vmatprep.subr.mxu0 0.0
      %1040 = vmatpush2.msra.mxu0 0.0
      %1041 = vmatprep.subr.mxu0 0.0
      %1042 = vmatpush2.msra.mxu0 0.0
      %1043 = vmatprep.subr.mxu0 0.0
      %1044 = vmatpush2.msra.mxu0 0.0
      %1045 = vmatprep.subr.mxu0 0.0
      %1046 = vmatpush2.msra.mxu0 0.0
      %1047 = vmatprep.subr.mxu0 0.0
      %1048 = vmatpush2.msra.mxu0 0.0
      %1049 = vmatprep.subr.mxu0 0.0
      %1050 = vmatpush2.msra.mxu0 0.0
      %1051 = vmatprep.mubr.f32.mxu0 0.0
      %1052 = vmatmul.mubr.f32.gmra.mxu0 %v964
      %v1053 = vpop.f32.mrf.mxu0
      %v1054 = vadd.f32 0.0, %v1053
      %v1055 = vpop.f32.mrf.mxu0
      %1056 = vmatprep.mubr.f32.mxu0 0.0
      %1057 = vmatmul.mubr.f32.gmra.mxu0 %v967
      %v1058 = vpop.f32.mrf.mxu0
      %v1059 = vadd.f32 0.0, %v1058
      %v1060 = vpop.f32.mrf.mxu0
      %1061 = vmatprep.mubr.f32.mxu0 0.0
      %1062 = vmatmul.mubr.f32.gmra.mxu0 %v970
      %v1063 = vpop.f32.mrf.mxu0
      %v1064 = vadd.f32 0.0, %v1063
      %v1065 = vpop.f32.mrf.mxu0
      %1066 = vmatprep.mubr.f32.mxu0 0.0
      %1067 = vmatmul.mubr.f32.gmra.mxu0 %v973
      %v1068 = vpop.f32.mrf.mxu0
      %v1069 = vadd.f32 0.0, %v1068
      %v1070 = vpop.f32.mrf.mxu0
      %1071 = vmatprep.mubr.f32.mxu0 0.0
      %1072 = vmatmul.mubr.f32.gmra.mxu0 %v976
      %v1073 = vpop.f32.mrf.mxu0
      %v1074 = vadd.f32 0.0, %v1073
      %v1075 = vpop.f32.mrf.mxu0
      %1076 = vmatprep.mubr.f32.mxu0 0.0
      %1077 = vmatmul.mubr.f32.gmra.mxu0 %v979
      %v1078 = vpop.f32.mrf.mxu0
      %v1079 = vadd.f32 0.0, %v1078
      %v1080 = vpop.f32.mrf.mxu0
      %1081 = vmatprep.mubr.f32.mxu0 0.0
      %1082 = vmatmul.mubr.f32.gmra.mxu0 %v982
      %v1083 = vpop.f32.mrf.mxu0
      %v1084 = vadd.f32 0.0, %v1083
      %v1085 = vpop.f32.mrf.mxu0
      %1086 = vmatprep.mubr.f32.mxu0 0.0
      %1087 = vmatmul.mubr.f32.gmra.mxu0 %v985
      %v1088 = vpop.f32.mrf.mxu0
      %v1089 = vadd.f32 0.0, %v1088
      %v1090 = vpop.f32.mrf.mxu0
      %1091 = vdwg.mxu0
      %v1092 = vadd.f32 %v941, %v1054
      %v1093 = vadd.f32 %v942, %v1059
      %v1094 = vadd.f32 %v943, %v1064
      %v1095 = vadd.f32 %v944, %v1069
      %v1096 = vadd.f32 %v945, %v1074
      %v1097 = vadd.f32 %v946, %v1079
      %v1098 = vadd.f32 %v947, %v1084
      %v1099 = vadd.f32 %v948, %v1089
      %s1100 = scalar_lea.vmem %s199, 32
      %v1101 = vld [vmem:[%s1100] sm:$0xff]
      %v1102 = vld [vmem:[%s1100 + $0x10] sm:$0xff]
      %v1103 = vld [vmem:[%s1100 + $0x20] sm:$0xff]
      %v1104 = vld [vmem:[%s1100 + $0x30] sm:$0xff]
      %v1105 = vld [vmem:[%s1100 + $0x40] sm:$0xff]
      %v1106 = vld [vmem:[%s1100 + $0x50] sm:$0xff]
      %v1107 = vld [vmem:[%s1100 + $0x60] sm:$0xff]
      %v1108 = vld [vmem:[%s1100 + $0x70] sm:$0xff]
      %s1109 = scalar_lea.vmem %s1, 240
      %v1110 = vld [vmem:[%s1109] sm:$0xff]
      %v1111 = vld [vmem:[%s1109 + $0x8] sm:$0xff]
      %v1112 = vld [vmem:[%s1109 + $0x10] sm:$0xff]
      %v1113 = vld [vmem:[%s1109 + $0x18] sm:$0xff]
      %v1114 = vld [vmem:[%s1109 + $0x20] sm:$0xff]
      %v1116 = vsel %vm236, %v1101, 0
      %v1119 = vsel %vm236, %v1102, 0
      %v1122 = vsel %vm236, %v1103, 0
      %v1125 = vsel %vm236, %v1104, 0
      %v1128 = vsel %vm236, %v1105, 0
      %v1131 = vsel %vm236, %v1106, 0
      %v1134 = vsel %vm236, %v1107, 0
      %v1137 = vsel %vm236, %v1108, 0
      %1139 = vmatprep.subr.mxu0 0.0
      %1140 = vmatpush1.msra.mxu0 0.0
      %1141 = vmatprep.subr.mxu0 0.0
      %1142 = vmatpush1.msra.mxu0 0.0
      %1143 = vmatprep.subr.mxu0 0.0
      %1144 = vmatpush1.msra.mxu0 0.0
      %1145 = vmatprep.subr.mxu0 0.0
      %1146 = vmatpush1.msra.mxu0 0.0
      %1147 = vmatprep.subr.mxu0 0.0
      %1148 = vmatpush1.msra.mxu0 0.0
      %1149 = vmatprep.subr.mxu0 0.0
      %1150 = vmatpush1.msra.mxu0 0.0
      %1151 = vmatprep.subr.mxu0 0.0
      %1152 = vmatpush1.msra.mxu0 0.0
      %1153 = vmatprep.subr.mxu0 0.0
      %1154 = vmatpush1.msra.mxu0 0.0
      %1155 = vmatprep.subr.mxu0 0.0
      %1156 = vmatpush1.msra.mxu0 0.0
      %1157 = vmatprep.subr.mxu0 0.0
      %1158 = vmatpush1.msra.mxu0 0.0
      %1159 = vmatprep.subr.mxu0 0.0
      %1160 = vmatpush1.msra.mxu0 0.0
      %1161 = vmatprep.subr.mxu0 0.0
      %1162 = vmatpush1.msra.mxu0 %v1114
      %1163 = vmatprep.subr.mxu0 0.0
      %1164 = vmatpush1.msra.mxu0 %v1113
      %1165 = vmatprep.subr.mxu0 0.0
      %1166 = vmatpush1.msra.mxu0 %v1112
      %1167 = vmatprep.subr.mxu0 0.0
      %1168 = vmatpush1.msra.mxu0 %v1111
      %1169 = vmatprep.subr.mxu0 0.0
      %1170 = vmatpush1.msra.mxu0 %v1110
      %1171 = vmatprep.subr.mxu0 0.0
      %1172 = vmatpush2.msra.mxu0 0.0
      %1173 = vmatprep.subr.mxu0 0.0
      %1174 = vmatpush2.msra.mxu0 0.0
      %1175 = vmatprep.subr.mxu0 0.0
      %1176 = vmatpush2.msra.mxu0 0.0
      %1177 = vmatprep.subr.mxu0 0.0
      %1178 = vmatpush2.msra.mxu0 0.0
      %1179 = vmatprep.subr.mxu0 0.0
      %1180 = vmatpush2.msra.mxu0 0.0
      %1181 = vmatprep.subr.mxu0 0.0
      %1182 = vmatpush2.msra.mxu0 0.0
      %1183 = vmatprep.subr.mxu0 0.0
      %1184 = vmatpush2.msra.mxu0 0.0
      %1185 = vmatprep.subr.mxu0 0.0
      %1186 = vmatpush2.msra.mxu0 0.0
      %1187 = vmatprep.subr.mxu0 0.0
      %1188 = vmatpush2.msra.mxu0 0.0
      %1189 = vmatprep.subr.mxu0 0.0
      %1190 = vmatpush2.msra.mxu0 0.0
      %1191 = vmatprep.subr.mxu0 0.0
      %1192 = vmatpush2.msra.mxu0 0.0
      %1193 = vmatprep.subr.mxu0 0.0
      %1194 = vmatpush2.msra.mxu0 0.0
      %1195 = vmatprep.subr.mxu0 0.0
      %1196 = vmatpush2.msra.mxu0 0.0
      %1197 = vmatprep.subr.mxu0 0.0
      %1198 = vmatpush2.msra.mxu0 0.0
      %1199 = vmatprep.subr.mxu0 0.0
      %1200 = vmatpush2.msra.mxu0 0.0
      %1201 = vmatprep.subr.mxu0 0.0
      %1202 = vmatpush2.msra.mxu0 0.0
      %1203 = vmatprep.mubr.f32.mxu0 0.0
      %1204 = vmatmul.mubr.f32.gmra.mxu0 %v1116
      %v1205 = vpop.f32.mrf.mxu0
      %v1206 = vadd.f32 0.0, %v1205
      %v1207 = vpop.f32.mrf.mxu0
      %1208 = vmatprep.mubr.f32.mxu0 0.0
      %1209 = vmatmul.mubr.f32.gmra.mxu0 %v1119
      %v1210 = vpop.f32.mrf.mxu0
      %v1211 = vadd.f32 0.0, %v1210
      %v1212 = vpop.f32.mrf.mxu0
      %1213 = vmatprep.mubr.f32.mxu0 0.0
      %1214 = vmatmul.mubr.f32.gmra.mxu0 %v1122
      %v1215 = vpop.f32.mrf.mxu0
      %v1216 = vadd.f32 0.0, %v1215
      %v1217 = vpop.f32.mrf.mxu0
      %1218 = vmatprep.mubr.f32.mxu0 0.0
      %1219 = vmatmul.mubr.f32.gmra.mxu0 %v1125
      %v1220 = vpop.f32.mrf.mxu0
      %v1221 = vadd.f32 0.0, %v1220
      %v1222 = vpop.f32.mrf.mxu0
      %1223 = vmatprep.mubr.f32.mxu0 0.0
      %1224 = vmatmul.mubr.f32.gmra.mxu0 %v1128
      %v1225 = vpop.f32.mrf.mxu0
      %v1226 = vadd.f32 0.0, %v1225
      %v1227 = vpop.f32.mrf.mxu0
      %1228 = vmatprep.mubr.f32.mxu0 0.0
      %1229 = vmatmul.mubr.f32.gmra.mxu0 %v1131
      %v1230 = vpop.f32.mrf.mxu0
      %v1231 = vadd.f32 0.0, %v1230
      %v1232 = vpop.f32.mrf.mxu0
      %1233 = vmatprep.mubr.f32.mxu0 0.0
      %1234 = vmatmul.mubr.f32.gmra.mxu0 %v1134
      %v1235 = vpop.f32.mrf.mxu0
      %v1236 = vadd.f32 0.0, %v1235
      %v1237 = vpop.f32.mrf.mxu0
      %1238 = vmatprep.mubr.f32.mxu0 0.0
      %1239 = vmatmul.mubr.f32.gmra.mxu0 %v1137
      %v1240 = vpop.f32.mrf.mxu0
      %v1241 = vadd.f32 0.0, %v1240
      %v1242 = vpop.f32.mrf.mxu0
      %1243 = vdwg.mxu0
      %v1244 = vadd.f32 %v1092, %v1206
      %v1245 = vadd.f32 %v1093, %v1211
      %v1246 = vadd.f32 %v1094, %v1216
      %v1247 = vadd.f32 %v1095, %v1221
      %v1248 = vadd.f32 %v1096, %v1226
      %v1249 = vadd.f32 %v1097, %v1231
      %v1250 = vadd.f32 %v1098, %v1236
      %v1251 = vadd.f32 %v1099, %v1241
      %v1252 = vld [vmem:[%s1100 + $0x1] sm:$0xff]
      %v1253 = vld [vmem:[%s1100 + $0x11] sm:$0xff]
      %v1254 = vld [vmem:[%s1100 + $0x21] sm:$0xff]
      %v1255 = vld [vmem:[%s1100 + $0x31] sm:$0xff]
      %v1256 = vld [vmem:[%s1100 + $0x41] sm:$0xff]
      %v1257 = vld [vmem:[%s1100 + $0x51] sm:$0xff]
      %v1258 = vld [vmem:[%s1100 + $0x61] sm:$0xff]
      %v1259 = vld [vmem:[%s1100 + $0x71] sm:$0xff]
      %s1260 = scalar_lea.vmem %s1, 280
      %v1261 = vld [vmem:[%s1260] sm:$0xff]
      %v1262 = vld [vmem:[%s1260 + $0x8] sm:$0xff]
      %v1263 = vld [vmem:[%s1260 + $0x10] sm:$0xff]
      %v1264 = vld [vmem:[%s1260 + $0x18] sm:$0xff]
      %v1265 = vld [vmem:[%s1260 + $0x20] sm:$0xff]
      %v1267 = vsel %vm236, %v1252, 0
      %v1270 = vsel %vm236, %v1253, 0
      %v1273 = vsel %vm236, %v1254, 0
      %v1276 = vsel %vm236, %v1255, 0
      %v1279 = vsel %vm236, %v1256, 0
      %v1282 = vsel %vm236, %v1257, 0
      %v1285 = vsel %vm236, %v1258, 0
      %v1288 = vsel %vm236, %v1259, 0
      %1290 = vmatprep.subr.mxu0 0.0
      %1291 = vmatpush1.msra.mxu0 0.0
      %1292 = vmatprep.subr.mxu0 0.0
      %1293 = vmatpush1.msra.mxu0 0.0
      %1294 = vmatprep.subr.mxu0 0.0
      %1295 = vmatpush1.msra.mxu0 0.0
      %1296 = vmatprep.subr.mxu0 0.0
      %1297 = vmatpush1.msra.mxu0 0.0
      %1298 = vmatprep.subr.mxu0 0.0
      %1299 = vmatpush1.msra.mxu0 0.0
      %1300 = vmatprep.subr.mxu0 0.0
      %1301 = vmatpush1.msra.mxu0 0.0
      %1302 = vmatprep.subr.mxu0 0.0
      %1303 = vmatpush1.msra.mxu0 0.0
      %1304 = vmatprep.subr.mxu0 0.0
      %1305 = vmatpush1.msra.mxu0 0.0
      %1306 = vmatprep.subr.mxu0 0.0
      %1307 = vmatpush1.msra.mxu0 0.0
      %1308 = vmatprep.subr.mxu0 0.0
      %1309 = vmatpush1.msra.mxu0 0.0
      %1310 = vmatprep.subr.mxu0 0.0
      %1311 = vmatpush1.msra.mxu0 0.0
      %1312 = vmatprep.subr.mxu0 0.0
      %1313 = vmatpush1.msra.mxu0 %v1265
      %1314 = vmatprep.subr.mxu0 0.0
      %1315 = vmatpush1.msra.mxu0 %v1264
      %1316 = vmatprep.subr.mxu0 0.0
      %1317 = vmatpush1.msra.mxu0 %v1263
      %1318 = vmatprep.subr.mxu0 0.0
      %1319 = vmatpush1.msra.mxu0 %v1262
      %1320 = vmatprep.subr.mxu0 0.0
      %1321 = vmatpush1.msra.mxu0 %v1261
      %1322 = vmatprep.subr.mxu0 0.0
      %1323 = vmatpush2.msra.mxu0 0.0
      %1324 = vmatprep.subr.mxu0 0.0
      %1325 = vmatpush2.msra.mxu0 0.0
      %1326 = vmatprep.subr.mxu0 0.0
      %1327 = vmatpush2.msra.mxu0 0.0
      %1328 = vmatprep.subr.mxu0 0.0
      %1329 = vmatpush2.msra.mxu0 0.0
      %1330 = vmatprep.subr.mxu0 0.0
      %1331 = vmatpush2.msra.mxu0 0.0
      %1332 = vmatprep.subr.mxu0 0.0
      %1333 = vmatpush2.msra.mxu0 0.0
      %1334 = vmatprep.subr.mxu0 0.0
      %1335 = vmatpush2.msra.mxu0 0.0
      %1336 = vmatprep.subr.mxu0 0.0
      %1337 = vmatpush2.msra.mxu0 0.0
      %1338 = vmatprep.subr.mxu0 0.0
      %1339 = vmatpush2.msra.mxu0 0.0
      %1340 = vmatprep.subr.mxu0 0.0
      %1341 = vmatpush2.msra.mxu0 0.0
      %1342 = vmatprep.subr.mxu0 0.0
      %1343 = vmatpush2.msra.mxu0 0.0
      %1344 = vmatprep.subr.mxu0 0.0
      %1345 = vmatpush2.msra.mxu0 0.0
      %1346 = vmatprep.subr.mxu0 0.0
      %1347 = vmatpush2.msra.mxu0 0.0
      %1348 = vmatprep.subr.mxu0 0.0
      %1349 = vmatpush2.msra.mxu0 0.0
      %1350 = vmatprep.subr.mxu0 0.0
      %1351 = vmatpush2.msra.mxu0 0.0
      %1352 = vmatprep.subr.mxu0 0.0
      %1353 = vmatpush2.msra.mxu0 0.0
      %1354 = vmatprep.mubr.f32.mxu0 0.0
      %1355 = vmatmul.mubr.f32.gmra.mxu0 %v1267
      %v1356 = vpop.f32.mrf.mxu0
      %v1357 = vadd.f32 0.0, %v1356
      %v1358 = vpop.f32.mrf.mxu0
      %1359 = vmatprep.mubr.f32.mxu0 0.0
      %1360 = vmatmul.mubr.f32.gmra.mxu0 %v1270
      %v1361 = vpop.f32.mrf.mxu0
      %v1362 = vadd.f32 0.0, %v1361
      %v1363 = vpop.f32.mrf.mxu0
      %1364 = vmatprep.mubr.f32.mxu0 0.0
      %1365 = vmatmul.mubr.f32.gmra.mxu0 %v1273
      %v1366 = vpop.f32.mrf.mxu0
      %v1367 = vadd.f32 0.0, %v1366
      %v1368 = vpop.f32.mrf.mxu0
      %1369 = vmatprep.mubr.f32.mxu0 0.0
      %1370 = vmatmul.mubr.f32.gmra.mxu0 %v1276
      %v1371 = vpop.f32.mrf.mxu0
      %v1372 = vadd.f32 0.0, %v1371
      %v1373 = vpop.f32.mrf.mxu0
      %1374 = vmatprep.mubr.f32.mxu0 0.0
      %1375 = vmatmul.mubr.f32.gmra.mxu0 %v1279
      %v1376 = vpop.f32.mrf.mxu0
      %v1377 = vadd.f32 0.0, %v1376
      %v1378 = vpop.f32.mrf.mxu0
      %1379 = vmatprep.mubr.f32.mxu0 0.0
      %1380 = vmatmul.mubr.f32.gmra.mxu0 %v1282
      %v1381 = vpop.f32.mrf.mxu0
      %v1382 = vadd.f32 0.0, %v1381
      %v1383 = vpop.f32.mrf.mxu0
      %1384 = vmatprep.mubr.f32.mxu0 0.0
      %1385 = vmatmul.mubr.f32.gmra.mxu0 %v1285
      %v1386 = vpop.f32.mrf.mxu0
      %v1387 = vadd.f32 0.0, %v1386
      %v1388 = vpop.f32.mrf.mxu0
      %1389 = vmatprep.mubr.f32.mxu0 0.0
      %1390 = vmatmul.mubr.f32.gmra.mxu0 %v1288
      %v1391 = vpop.f32.mrf.mxu0
      %v1392 = vadd.f32 0.0, %v1391
      %v1393 = vpop.f32.mrf.mxu0
      %1394 = vdwg.mxu0
      %v1395 = vadd.f32 %v1244, %v1357
      %v1396 = vadd.f32 %v1245, %v1362
      %v1397 = vadd.f32 %v1246, %v1367
      %v1398 = vadd.f32 %v1247, %v1372
      %v1399 = vadd.f32 %v1248, %v1377
      %v1400 = vadd.f32 %v1249, %v1382
      %v1401 = vadd.f32 %v1250, %v1387
      %v1402 = vadd.f32 %v1251, %v1392
      %v1403 = vld [vmem:[%s1100 + $0x2] sm:$0xff]
      %v1404 = vld [vmem:[%s1100 + $0x12] sm:$0xff]
      %v1405 = vld [vmem:[%s1100 + $0x22] sm:$0xff]
      %v1406 = vld [vmem:[%s1100 + $0x32] sm:$0xff]
      %v1407 = vld [vmem:[%s1100 + $0x42] sm:$0xff]
      %v1408 = vld [vmem:[%s1100 + $0x52] sm:$0xff]
      %v1409 = vld [vmem:[%s1100 + $0x62] sm:$0xff]
      %v1410 = vld [vmem:[%s1100 + $0x72] sm:$0xff]
      %s1411 = scalar_lea.vmem %s1, 320
      %v1412 = vld [vmem:[%s1411] sm:$0xff]
      %v1413 = vld [vmem:[%s1411 + $0x8] sm:$0xff]
      %v1414 = vld [vmem:[%s1411 + $0x10] sm:$0xff]
      %v1415 = vld [vmem:[%s1411 + $0x18] sm:$0xff]
      %v1416 = vld [vmem:[%s1411 + $0x20] sm:$0xff]
      %v1418 = vsel %vm236, %v1403, 0
      %v1421 = vsel %vm236, %v1404, 0
      %v1424 = vsel %vm236, %v1405, 0
      %v1427 = vsel %vm236, %v1406, 0
      %v1430 = vsel %vm236, %v1407, 0
      %v1433 = vsel %vm236, %v1408, 0
      %v1436 = vsel %vm236, %v1409, 0
      %v1439 = vsel %vm236, %v1410, 0
      %1441 = vmatprep.subr.mxu0 0.0
      %1442 = vmatpush1.msra.mxu0 0.0
      %1443 = vmatprep.subr.mxu0 0.0
      %1444 = vmatpush1.msra.mxu0 0.0
      %1445 = vmatprep.subr.mxu0 0.0
      %1446 = vmatpush1.msra.mxu0 0.0
      %1447 = vmatprep.subr.mxu0 0.0
      %1448 = vmatpush1.msra.mxu0 0.0
      %1449 = vmatprep.subr.mxu0 0.0
      %1450 = vmatpush1.msra.mxu0 0.0
      %1451 = vmatprep.subr.mxu0 0.0
      %1452 = vmatpush1.msra.mxu0 0.0
      %1453 = vmatprep.subr.mxu0 0.0
      %1454 = vmatpush1.msra.mxu0 0.0
      %1455 = vmatprep.subr.mxu0 0.0
      %1456 = vmatpush1.msra.mxu0 0.0
      %1457 = vmatprep.subr.mxu0 0.0
      %1458 = vmatpush1.msra.mxu0 0.0
      %1459 = vmatprep.subr.mxu0 0.0
      %1460 = vmatpush1.msra.mxu0 0.0
      %1461 = vmatprep.subr.mxu0 0.0
      %1462 = vmatpush1.msra.mxu0 0.0
      %1463 = vmatprep.subr.mxu0 0.0
      %1464 = vmatpush1.msra.mxu0 %v1416
      %1465 = vmatprep.subr.mxu0 0.0
      %1466 = vmatpush1.msra.mxu0 %v1415
      %1467 = vmatprep.subr.mxu0 0.0
      %1468 = vmatpush1.msra.mxu0 %v1414
      %1469 = vmatprep.subr.mxu0 0.0
      %1470 = vmatpush1.msra.mxu0 %v1413
      %1471 = vmatprep.subr.mxu0 0.0
      %1472 = vmatpush1.msra.mxu0 %v1412
      %1473 = vmatprep.subr.mxu0 0.0
      %1474 = vmatpush2.msra.mxu0 0.0
      %1475 = vmatprep.subr.mxu0 0.0
      %1476 = vmatpush2.msra.mxu0 0.0
      %1477 = vmatprep.subr.mxu0 0.0
      %1478 = vmatpush2.msra.mxu0 0.0
      %1479 = vmatprep.subr.mxu0 0.0
      %1480 = vmatpush2.msra.mxu0 0.0
      %1481 = vmatprep.subr.mxu0 0.0
      %1482 = vmatpush2.msra.mxu0 0.0
      %1483 = vmatprep.subr.mxu0 0.0
      %1484 = vmatpush2.msra.mxu0 0.0
      %1485 = vmatprep.subr.mxu0 0.0
      %1486 = vmatpush2.msra.mxu0 0.0
      %1487 = vmatprep.subr.mxu0 0.0
      %1488 = vmatpush2.msra.mxu0 0.0
      %1489 = vmatprep.subr.mxu0 0.0
      %1490 = vmatpush2.msra.mxu0 0.0
      %1491 = vmatprep.subr.mxu0 0.0
      %1492 = vmatpush2.msra.mxu0 0.0
      %1493 = vmatprep.subr.mxu0 0.0
      %1494 = vmatpush2.msra.mxu0 0.0
      %1495 = vmatprep.subr.mxu0 0.0
      %1496 = vmatpush2.msra.mxu0 0.0
      %1497 = vmatprep.subr.mxu0 0.0
      %1498 = vmatpush2.msra.mxu0 0.0
      %1499 = vmatprep.subr.mxu0 0.0
      %1500 = vmatpush2.msra.mxu0 0.0
      %1501 = vmatprep.subr.mxu0 0.0
      %1502 = vmatpush2.msra.mxu0 0.0
      %1503 = vmatprep.subr.mxu0 0.0
      %1504 = vmatpush2.msra.mxu0 0.0
      %1505 = vmatprep.mubr.f32.mxu0 0.0
      %1506 = vmatmul.mubr.f32.gmra.mxu0 %v1418
      %v1507 = vpop.f32.mrf.mxu0
      %v1508 = vadd.f32 0.0, %v1507
      %v1509 = vpop.f32.mrf.mxu0
      %1510 = vmatprep.mubr.f32.mxu0 0.0
      %1511 = vmatmul.mubr.f32.gmra.mxu0 %v1421
      %v1512 = vpop.f32.mrf.mxu0
      %v1513 = vadd.f32 0.0, %v1512
      %v1514 = vpop.f32.mrf.mxu0
      %1515 = vmatprep.mubr.f32.mxu0 0.0
      %1516 = vmatmul.mubr.f32.gmra.mxu0 %v1424
      %v1517 = vpop.f32.mrf.mxu0
      %v1518 = vadd.f32 0.0, %v1517
      %v1519 = vpop.f32.mrf.mxu0
      %1520 = vmatprep.mubr.f32.mxu0 0.0
      %1521 = vmatmul.mubr.f32.gmra.mxu0 %v1427
      %v1522 = vpop.f32.mrf.mxu0
      %v1523 = vadd.f32 0.0, %v1522
      %v1524 = vpop.f32.mrf.mxu0
      %1525 = vmatprep.mubr.f32.mxu0 0.0
      %1526 = vmatmul.mubr.f32.gmra.mxu0 %v1430
      %v1527 = vpop.f32.mrf.mxu0
      %v1528 = vadd.f32 0.0, %v1527
      %v1529 = vpop.f32.mrf.mxu0
      %1530 = vmatprep.mubr.f32.mxu0 0.0
      %1531 = vmatmul.mubr.f32.gmra.mxu0 %v1433
      %v1532 = vpop.f32.mrf.mxu0
      %v1533 = vadd.f32 0.0, %v1532
      %v1534 = vpop.f32.mrf.mxu0
      %1535 = vmatprep.mubr.f32.mxu0 0.0
      %1536 = vmatmul.mubr.f32.gmra.mxu0 %v1436
      %v1537 = vpop.f32.mrf.mxu0
      %v1538 = vadd.f32 0.0, %v1537
      %v1539 = vpop.f32.mrf.mxu0
      %1540 = vmatprep.mubr.f32.mxu0 0.0
      %1541 = vmatmul.mubr.f32.gmra.mxu0 %v1439
      %v1542 = vpop.f32.mrf.mxu0
      %v1543 = vadd.f32 0.0, %v1542
      %v1544 = vpop.f32.mrf.mxu0
      %1545 = vdwg.mxu0
      %v1546 = vadd.f32 %v1395, %v1508
      %v1547 = vadd.f32 %v1396, %v1513
      %v1548 = vadd.f32 %v1397, %v1518
      %v1549 = vadd.f32 %v1398, %v1523
      %v1550 = vadd.f32 %v1399, %v1528
      %v1551 = vadd.f32 %v1400, %v1533
      %v1552 = vadd.f32 %v1401, %v1538
      %v1553 = vadd.f32 %v1402, %v1543
      %v1554 = vld [vmem:[%s2] sm:$0x1]
      %v1556 = vlaneseq
      %v1557 = vshrl.u32 %v1556, 7
      %v1558 = vsub.s32 0, %v1557
      %v1559 = vrot.slane %v1554, %v1558
      %v1561 = vadd.f32 %v1546, %v1559
      %v1562 = vadd.f32 %v1547, %v1559
      %v1563 = vadd.f32 %v1548, %v1559
      %v1564 = vadd.f32 %v1549, %v1559
      %v1565 = vadd.f32 %v1550, %v1559
      %v1566 = vadd.f32 %v1551, %v1559
      %v1567 = vadd.f32 %v1552, %v1559
      %v1568 = vadd.f32 %v1553, %v1559
      %vm1569 = vcmp.ge.f32.partialorder %v1561, 0.0
      %vm1570 = vcmp.ge.f32.partialorder %v1562, 0.0
      %vm1571 = vcmp.ge.f32.partialorder %v1563, 0.0
      %vm1572 = vcmp.ge.f32.partialorder %v1564, 0.0
      %vm1573 = vcmp.ge.f32.partialorder %v1565, 0.0
      %vm1574 = vcmp.ge.f32.partialorder %v1566, 0.0
      %vm1575 = vcmp.ge.f32.partialorder %v1567, 0.0
      %vm1576 = vcmp.ge.f32.partialorder %v1568, 0.0
      %v1577 = vmul.f32 %v1561, 0.01
      %v1578 = vmul.f32 %v1562, 0.01
      %v1579 = vmul.f32 %v1563, 0.01
      %v1580 = vmul.f32 %v1564, 0.01
      %v1581 = vmul.f32 %v1565, 0.01
      %v1582 = vmul.f32 %v1566, 0.01
      %v1583 = vmul.f32 %v1567, 0.01
      %v1584 = vmul.f32 %v1568, 0.01
      %v1585 = vsel %vm1569, %v1561, %v1577
      %v1586 = vsel %vm1570, %v1562, %v1578
      %v1587 = vsel %vm1571, %v1563, %v1579
      %v1588 = vsel %vm1572, %v1564, %v1580
      %v1589 = vsel %vm1573, %v1565, %v1581
      %v1590 = vsel %vm1574, %v1566, %v1582
      %v1591 = vsel %vm1575, %v1567, %v1583
      %v1592 = vsel %vm1576, %v1568, %v1584
      %vm1593 = vcmask 523264
      %1594 = vst.msk [vmem:[%s204] sm:$0xff] %vm1593, %v1585
      %1595 = vst.msk [vmem:[%s204 + $0x8] sm:$0xff] %vm1593, %v1586
      %1596 = vst.msk [vmem:[%s204 + $0x10] sm:$0xff] %vm1593, %v1587
      %1597 = vst.msk [vmem:[%s204 + $0x18] sm:$0xff] %vm1593, %v1588
      %1598 = vst.msk [vmem:[%s204 + $0x20] sm:$0xff] %vm1593, %v1589
      %1599 = vst.msk [vmem:[%s204 + $0x28] sm:$0xff] %vm1593, %v1590
      %1600 = vst.msk [vmem:[%s204 + $0x30] sm:$0xff] %vm1593, %v1591
      %1601 = vst.msk [vmem:[%s204 + $0x38] sm:$0xff] %vm1593, %v1592
      %v1602 = vsel %vm1593, %v1585, 0.0
      %v1603 = vsel %vm1593, %v1586, 0.0
      %v1604 = vadd.f32 %v1602, %v1603
      %v1605 = vsel %vm1593, %v1587, 0.0
      %v1606 = vadd.f32 %v1604, %v1605
      %v1607 = vsel %vm1593, %v1588, 0.0
      %v1608 = vadd.f32 %v1606, %v1607
      %v1609 = vsel %vm1593, %v1589, 0.0
      %v1610 = vadd.f32 %v1608, %v1609
      %v1611 = vsel %vm1593, %v1590, 0.0
      %v1612 = vadd.f32 %v1610, %v1611
      %v1613 = vsel %vm1593, %v1591, 0.0
      %v1614 = vadd.f32 %v1612, %v1613
      %v1615 = vsel %vm1593, %v1592, 0.0
      %v1616 = vadd.f32 %v1614, %v1615
      %v1617 = vrot.slane %v1616, 4
      %v1618 = vadd.f32 %v1616, %v1617
      %v1619 = vrot.slane %v1618, 2
      %v1620 = vadd.f32 %v1618, %v1619
      %v1621 = vrot.slane %v1620, 1
      %v1622 = vadd.f32 %v1620, %v1621
      %vm1623 = vcmask 516096
      %1624 = vst.msk [vmem:[%s208] sm:$0x1] %vm1623, %v1622
      %v1625 = vmul.f32 %v1585, %v1585
      %v1626 = vmul.f32 %v1586, %v1586
      %v1627 = vmul.f32 %v1587, %v1587
      %v1628 = vmul.f32 %v1588, %v1588
      %v1629 = vmul.f32 %v1589, %v1589
      %v1630 = vmul.f32 %v1590, %v1590
      %v1631 = vmul.f32 %v1591, %v1591
      %v1632 = vmul.f32 %v1592, %v1592
      %v1633 = vsel %vm1593, %v1625, 0.0
      %v1634 = vsel %vm1593, %v1626, 0.0
      %v1635 = vadd.f32 %v1633, %v1634
      %v1636 = vsel %vm1593, %v1627, 0.0
      %v1637 = vadd.f32 %v1635, %v1636
      %v1638 = vsel %vm1593, %v1628, 0.0
      %v1639 = vadd.f32 %v1637, %v1638
      %v1640 = vsel %vm1593, %v1629, 0.0
      %v1641 = vadd.f32 %v1639, %v1640
      %v1642 = vsel %vm1593, %v1630, 0.0
      %v1643 = vadd.f32 %v1641, %v1642
      %v1644 = vsel %vm1593, %v1631, 0.0
      %v1645 = vadd.f32 %v1643, %v1644
      %v1646 = vsel %vm1593, %v1632, 0.0
      %v1647 = vadd.f32 %v1645, %v1646
      %v1648 = vrot.slane %v1647, 4
      %v1649 = vadd.f32 %v1647, %v1648
      %v1650 = vrot.slane %v1649, 2
      %v1651 = vadd.f32 %v1649, %v1650
      %v1652 = vrot.slane %v1651, 1
      %v1653 = vadd.f32 %v1651, %v1652
      %1654 = vst.msk [vmem:[%s208 + $0x1] sm:$0x1] %vm1623, %v1653
      %p1655 = scmp.lt.s32.totalorder %s16, 1
      %s1656 = scalar_select %p1655, %s16, 1
      %s1657 = smul.addr %s1656, 8
      %s1658 = smul.addr %s1657, 8
      %s1659 = scalar_lea.vmem %s3, %s1658
      %p1660 = scmp.lt.s32.totalorder %s16, 1
      %s1661 = scalar_select %p1660, %s16, 1
      %s1662 = smul.addr %s1661, 2
      %s1663 = scalar_lea.vmem %s4, %s1662
      // Predicated region
      $region33: #{decoder_upsample_block.2} parent=31 // pred_check
        %p1664 = pneg %p102
      $region34: #{decoder_upsample_block.2} parent=31 // pred_check_branch
        %1666 = sbr.rel (%p1664) target = $region36
      $region35: #{decoder_upsample_block.2} parent=31 // pred_region
        _
      $region36: #{decoder_upsample_block.2} parent=31 // pred_fallthru
        _
      // Predicated region
      $region37: #{decoder_upsample_block.2} parent=31 // pred_check
        %p1667 = pneg %p128
      $region38: #{decoder_upsample_block.2} parent=31 // pred_check_branch
        %1669 = sbr.rel (%p1667) target = $region40
      $region39: #{decoder_upsample_block.2} parent=31 // pred_region
        _
      $region40: #{decoder_upsample_block.2} parent=31 // pred_fallthru
        _
    $region32: #{decoder_upsample_block.2} parent=5 // pred_fallthru
      _
    %p1670 = scmp.le.s32.totalorder 2, %s11
    // Predicated region
    $region41: #{decoder_upsample_block.2} parent=5 // pred_check
      %p1671 = pneg %p1670
    $region42: #{decoder_upsample_block.2} parent=5 // pred_check_branch
      %1673 = sbr.rel (%p1671) target = $region44
    $region43: #{decoder_upsample_block.2} parent=5 // pred_region
      %s1674 = ssub.s32 %s11, 2
      // Predicated region
      $region45: #{decoder_upsample_block.2} parent=43 // pred_check
        %p1675 = pneg %p108
      $region46: #{decoder_upsample_block.2} parent=43 // pred_check_branch
        %1677 = sbr.rel (%p1675) target = $region48
      $region47: #{decoder_upsample_block.2} parent=43 // pred_region
        %p1678 = scmp.lt.s32.totalorder %s17, 1
        %s1679 = scalar_select %p1678, %s17, 1
        %s1680 = smul.addr %s1679, 8
        %s1681 = smul.addr %s1680, 8
        %s1682 = scalar_lea.vmem %s3, %s1681
      $region48: #{decoder_upsample_block.2} parent=43 // pred_fallthru
        _
      // Predicated region
      $region49: #{decoder_upsample_block.2} parent=43 // pred_check
        %p1683 = pneg %p134
      $region50: #{decoder_upsample_block.2} parent=43 // pred_check_branch
        %1685 = sbr.rel (%p1683) target = $region52
      $region51: #{decoder_upsample_block.2} parent=43 // pred_region
        %p1686 = scmp.lt.s32.totalorder %s17, 1
        %s1687 = scalar_select %p1686, %s17, 1
        %s1688 = smul.addr %s1687, 2
        %s1689 = scalar_lea.vmem %s4, %s1688
      $region52: #{decoder_upsample_block.2} parent=43 // pred_fallthru
        _
    $region44: #{decoder_upsample_block.2} parent=5 // pred_fallthru
      _
  $region6: #{decoder_upsample_block.2} parent=0 // loop_footer
    %s15 = sadd.s32 1, %s11
  $region7: #{decoder_upsample_block.2} parent=0 // loop_footer_branch
    %10 = sbr.rel target = $region3
  $region8: #{decoder_upsample_block.2} parent=0 // loop_exit
    _

</llo_original>
